<compile_context>
chip_gen: v7x
topology: tpu7x:2x2x1
jax: 0.10.0
libtpu: 0.0.40
codegen_flags: <defaults>
</compile_context>

<pallas_src>
import math
from functools import partial

import jax
import jax.numpy as jnp
from jax.experimental import pallas as pl
from jax.experimental.pallas import tpu as pltpu

C_FEAT = 32        # backbone output channels
KSIZE = 3          # backbone conv kernel
STRIDE = 2
PAD = 1
LANG_L = 8         # language sequence length
LANG_D = 32        # language embedding dim
ALPHA_GIOU = 2.0   # criterion weights
ALPHA_L1 = 5.0
ALPHA_CONF = 1.0


# ----------------------------------------------------------------------------
# generation-aware batch-block selection
# ----------------------------------------------------------------------------
def _num_tensorcores():
    """v7x has 2 TensorCores per chip; v5e/v6e have 1."""
    try:
        kind = jax.devices()[0].device_kind.lower()
    except Exception:
        return 1
    return 2 if ("v7" in kind or "7x" in kind) else 1


def _pick_batch_block(n, num_cores):
    # v5e/v6e: one big grid step (per-step overhead dominates at these sizes);
    # v7x: keep >= num_cores parallel steps so both TensorCores get work.
    if num_cores <= 1:
        return n
    target = max(1, -(-n // num_cores))          # ceil(n / cores)
    for tb in range(target, 0, -1):
        if n % tb == 0:
            return tb
    return 1


# ----------------------------------------------------------------------------
# XLA-side im2col on RAW pixels (pad value 255*mean -> normalizes to exactly 0
# once the normalization is folded into the conv weights/bias)
# ----------------------------------------------------------------------------
def _im2col_batched(x, k, stride, pad, pad_val):
    n, h, w, c = x.shape
    x = x.astype(jnp.float32)
    xp = jnp.pad(x - pad_val, ((0, 0), (pad, pad), (pad, pad), (0, 0))) + pad_val
    ho = (h + 2 * pad - k) // stride + 1
    wo = (w + 2 * pad - k) // stride + 1
    cols = []
    for dy in range(k):
        for dx in range(k):
            cols.append(xp[:, dy:dy + stride * ho:stride,
                           dx:dx + stride * wo:stride, :])
    patches = jnp.stack(cols, axis=3)            # (n, ho, wo, k*k, c)
    return patches.reshape(n, ho * wo, k * k * c)


# ----------------------------------------------------------------------------
# the single fused kernel:
#   conv backbone (im2col matmul) -> language gate -> correlation neck ->
#   two task heads -> softmax confidence fusion -> (folded) fused head
# one grid step processes `tb` batch elements; everything stays in VMEM/vregs.
# per-batch output row: [box0(4), conf0, box1(4), conf1, boxf(4), conff, pad]
# ----------------------------------------------------------------------------
def _fused_forward_kernel(*refs, inv_sqrt_c, use_language, tb, t_len, s_len, c):
    if use_language:
        (cols_ref, lang_ref, mask_ref,
         cw_ref, cb_ref, pw_ref, pb_ref, lw_ref, lb_ref,
         hw1_ref, hw2_ref, hb_ref, bcw_ref, bcb_ref, o_ref) = refs
    else:
        (cols_ref,
         cw_ref, cb_ref, pw_ref, pb_ref,
         hw1_ref, hw2_ref, hb_ref, bcw_ref, bcb_ref, o_ref) = refs

    p_len = t_len + s_len

    # ---- backbone: one (TB*(T+S), 27) @ (27, C) matmul + ReLU (bf16 -> f32) ----
    feat_all = jnp.maximum(
        jnp.dot(cols_ref[...], cw_ref[...],
                preferred_element_type=jnp.float32) + cb_ref[...], 0.0)
    feat_all = feat_all.reshape(tb, p_len, c)               # (TB, T+S, C) f32
    z_bf = feat_all[:, :t_len, :].astype(jnp.bfloat16)      # template features
    s_f32 = feat_all[:, t_len:, :]                          # search features
    s_bf = s_f32.astype(jnp.bfloat16)

    # ---- language gate: masked mean-pool -> linear -> sigmoid ----
    if use_language:
        lang = lang_ref[...]                                # (TB, L, D)
        mask = mask_ref[...][:, 0, :]                       # (TB, L)
        cnt = jnp.maximum(jnp.sum(mask, axis=-1, keepdims=True), 1.0)
        pooled_l = jnp.sum(mask[:, :, None] * lang, axis=1) / cnt    # (TB, D)
        gate = jax.nn.sigmoid(
            jnp.dot(pooled_l, lw_ref[...],
                    preferred_element_type=jnp.float32) + lb_ref[...])
        gate = gate[:, None, :]                             # (TB, 1, C)

    # ---- neck: template/search correlation + projection (batch in M) ----
    corr = jnp.einsum('bsc,btc->bst', s_bf, z_bf,
                      preferred_element_type=jnp.float32) * inv_sqrt_c
    corr_bf = corr.astype(jnp.bfloat16).reshape(tb * s_len, t_len)
    feat = jnp.maximum(
        jnp.dot(corr_bf, pw_ref[...],
                preferred_element_type=jnp.float32) + pb_ref[...], 0.0)
    feat3 = feat.reshape(tb, s_len, c)                      # (TB, S, C) f32

    # ---- two task heads; lane-concat replaced by sums of K=C matmuls ----
    # task 0 inputs: (corr_feat, search); task 1 inputs: (search*g, corr_feat*g)
    hw1 = hw1_ref[...]
    hw2 = hw2_ref[...]
    hb = hb_ref[...]
    feat_bf = feat.astype(jnp.bfloat16)                     # (TB*S, C)
    s_flat = s_bf.reshape(tb * s_len, c)
    pre0 = (jnp.dot(feat_bf, hw1, preferred_element_type=jnp.float32)
            + jnp.dot(s_flat, hw2, preferred_element_type=jnp.float32) + hb)
    if use_language:
        a1 = (s_f32 * gate).astype(jnp.bfloat16).reshape(tb * s_len, c)
        b1 = (feat3 * gate).astype(jnp.bfloat16).reshape(tb * s_len, c)
    else:
        a1, b1 = s_flat, feat_bf
    pre1 = (jnp.dot(a1, hw1, preferred_element_type=jnp.float32)
            + jnp.dot(b1, hw2, preferred_element_type=jnp.float32) + hb)

    pooled0 = jnp.mean(jnp.maximum(pre0, 0.0).reshape(tb, s_len, c), axis=1)
    pooled1 = jnp.mean(jnp.maximum(pre1, 0.0).reshape(tb, s_len, c), axis=1)

    bcw = bcw_ref[...]
    bcb = bcb_ref[...]
    bc0 = jnp.dot(pooled0, bcw, preferred_element_type=jnp.float32) + bcb
    bc1 = jnp.dot(pooled1, bcw, preferred_element_type=jnp.float32) + bcb
    box0, conf0 = jax.nn.sigmoid(bc0[:, 0:4]), bc0[:, 4:5]
    box1, conf1 = jax.nn.sigmoid(bc1[:, 0:4]), bc1[:, 4:5]

    # ---- softmax fusion of the two confidence logits + folded fused head ----
    # exact fold: pre_f = w0*pre0 + w1*pre1 (w0 + w1 == 1 and the bias is
    # affine), so the third head matmul and the catf blend are eliminated.
    m = jnp.maximum(conf0, conf1)
    e0 = jnp.exp(conf0 - m)
    e1 = jnp.exp(conf1 - m)
    inv = 1.0 / (e0 + e1)                 # exact division keeps w0 + w1 == 1
    w0 = (e0 * inv)[:, :, None]
    w1 = (e1 * inv)[:, :, None]
    pre_f = (w0 * pre0.reshape(tb, s_len, c)
             + w1 * pre1.reshape(tb, s_len, c))
    pooledf = jnp.mean(jnp.maximum(pre_f, 0.0), axis=1)     # (TB, C)
    bcf = jnp.dot(pooledf, bcw, preferred_element_type=jnp.float32) + bcb
    boxf, conff = jax.nn.sigmoid(bcf[:, 0:4]), bcf[:, 4:5]

    out = jnp.concatenate(
        [box0, conf0, box1, conf1, boxf, conff,
         jnp.zeros((tb, 1), jnp.float32)], axis=-1)         # (TB, 16)
    o_ref[...] = out[:, None, :]                            # (TB, 1, 16)


def fused_forward(cols2d, lang, lang_mask, params, *, use_language,
                  block_b, n, t_len, s_len):
    c = C_FEAT
    p_len = t_len + s_len

    # fold (x/255 - mean)/std into the conv weight / bias (exact in f32)
    mean, std = params["mean"], params["std"]
    scale = 1.0 / (255.0 * std)                  # (3,)
    shift = -mean / std                          # (3,)
    w_eff = (params["conv_w"]
             * jnp.tile(scale, KSIZE * KSIZE)[:, None]).astype(jnp.bfloat16)
    b_eff = params["conv_b"] + jnp.tile(shift, KSIZE * KSIZE)[None, :] @ params["conv_w"]

    proj_w = params["proj_w"].astype(jnp.bfloat16)
    hw1 = params["head_w1"].astype(jnp.bfloat16)
    hw2 = params["head_w2"].astype(jnp.bfloat16)
    bc_w = jnp.concatenate([params["box_w"], params["conf_w"]], axis=1)   # (C,5)
    bc_b = jnp.concatenate([params["box_b"], params["conf_b"]], axis=1)   # (1,5)

    def shared(arr):
        nd = arr.ndim
        return pl.BlockSpec(arr.shape, lambda b, _nd=nd: (0,) * _nd)

    inputs = [cols2d]
    in_specs = [pl.BlockSpec((block_b * p_len, cols2d.shape[1]),
                             lambda b: (b, 0))]
    if use_language:
        l_len = lang.shape[1]
        mask3 = lang_mask.reshape(n, 1, l_len).astype(jnp.float32)
        inputs += [lang.astype(jnp.float32), mask3]
        in_specs += [pl.BlockSpec((block_b, l_len, lang.shape[2]),
                                  lambda b: (b, 0, 0)),
                     pl.BlockSpec((block_b, 1, l_len), lambda b: (b, 0, 0))]

    weights = [w_eff, b_eff, proj_w, params["proj_b"]]
    if use_language:
        weights += [params["lang_w"], params["lang_b"]]
    weights += [hw1, hw2, params["head_b"], bc_w, bc_b]
    inputs += weights
    in_specs += [shared(wt) for wt in weights]

    out = pl.pallas_call(
        partial(_fused_forward_kernel,
                inv_sqrt_c=1.0 / math.sqrt(c),
                use_language=use_language,
                tb=block_b, t_len=t_len, s_len=s_len, c=c),
        out_shape=jax.ShapeDtypeStruct((n, 1, 16), jnp.float32),
        grid=(n // block_b,),
        in_specs=in_specs,
        out_specs=pl.BlockSpec((block_b, 1, 16), lambda b: (b, 0, 0)),
        compiler_params=pltpu.CompilerParams(
            dimension_semantics=("parallel",)),
    )(*inputs)
    return out.reshape(n, 16)


# ----------------------------------------------------------------------------
# box utilities / _compute_iou / criterion (tiny (N,4) glue — plain JAX)
# ----------------------------------------------------------------------------
def cxcywh_to_xyxy(box):
    cx, cy, w, h = box[:, 0], box[:, 1], box[:, 2], box[:, 3]
    return jnp.stack([cx - w / 2, cy - h / 2, cx + w / 2, cy + h / 2], axis=-1)


def _pair_iou_giou(a, b):
    x1 = jnp.maximum(a[:, 0], b[:, 0]); y1 = jnp.maximum(a[:, 1], b[:, 1])
    x2 = jnp.minimum(a[:, 2], b[:, 2]); y2 = jnp.minimum(a[:, 3], b[:, 3])
    inter = jnp.clip(x2 - x1, 0.0) * jnp.clip(y2 - y1, 0.0)
    area_a = jnp.clip(a[:, 2] - a[:, 0], 0.0) * jnp.clip(a[:, 3] - a[:, 1], 0.0)
    area_b = jnp.clip(b[:, 2] - b[:, 0], 0.0) * jnp.clip(b[:, 3] - b[:, 1], 0.0)
    union = area_a + area_b - inter
    iou = inter / jnp.maximum(union, 1e-6)
    ex1 = jnp.minimum(a[:, 0], b[:, 0]); ey1 = jnp.minimum(a[:, 1], b[:, 1])
    ex2 = jnp.maximum(a[:, 2], b[:, 2]); ey2 = jnp.maximum(a[:, 3], b[:, 3])
    enc = jnp.clip(ex2 - ex1, 0.0) * jnp.clip(ey2 - ey1, 0.0)
    giou = iou - (enc - union) / jnp.maximum(enc, 1e-6)
    return iou, giou


def compute_iou(pred_box, target_box):
    pred = jnp.clip(pred_box, 0.0, 1.0)            # clip_boxes_to_image((1,1))
    iou, _ = _pair_iou_giou(pred, target_box)
    return iou.reshape(-1, 1)


def criterion(prediction, targets, alpha_giou, alpha_l1, alpha_conf):
    pred_box, pred_conf = prediction
    target_box, target_iou = targets
    iou, giou = _pair_iou_giou(pred_box, target_box)
    giou_loss = jnp.mean(1.0 - giou)
    l1_loss = jnp.mean(jnp.abs(pred_box - target_box))
    conf_loss = jnp.mean(jnp.abs(jax.nn.sigmoid(pred_conf) - target_iou))
    total = alpha_giou * giou_loss + alpha_l1 * l1_loss + alpha_conf * conf_loss
    miou = jnp.mean(iou)
    return (total, giou_loss, l1_loss, conf_loss), (miou,)


# ----------------------------------------------------------------------------
# MultimodalModel.forward
# ----------------------------------------------------------------------------
@partial(jax.jit, static_argnames=("use_language", "block_b"))
def _forward_core(params, template, search, target, lang, lang_mask,
                  use_language, block_b):
    img_t = jnp.transpose(template, (0, 2, 3, 1))  # NCHW -> NHWC
    img_s = jnp.transpose(search, (0, 2, 3, 1))

    # raw-pixel im2col; pad value 255*mean normalizes to exactly 0 after the
    # norm fold inside the kernel.
    pad_val = (255.0 * params["mean"]).reshape(1, 1, 1, 3)
    cols_t = _im2col_batched(img_t, KSIZE, STRIDE, PAD, pad_val)   # (N, T, 27)
    cols_s = _im2col_batched(img_s, KSIZE, STRIDE, PAD, pad_val)   # (N, S, 27)
    n = cols_s.shape[0]
    t_len, s_len = cols_t.shape[1], cols_s.shape[1]
    # row layout per batch: [template rows | search rows]; batch flattened in M
    cols2d = jnp.concatenate([cols_t, cols_s], axis=1).reshape(
        n * (t_len + s_len), -1).astype(jnp.bfloat16)

    heads_out = fused_forward(cols2d, lang, lang_mask, params,
                              use_language=use_language, block_b=block_b,
                              n=n, t_len=t_len, s_len=s_len)       # (N, 16)
    box0, conf0 = heads_out[:, 0:4], heads_out[:, 4:5]
    box1, conf1 = heads_out[:, 5:9], heads_out[:, 9:10]
    boxf, conff = heads_out[:, 10:14], heads_out[:, 14:15]

    pred_box = cxcywh_to_xyxy(boxf)                # fused head emits cxcywh
    targets = [target, compute_iou(pred_box, jax.lax.stop_gradient(target))]
    losses, metrics = criterion((pred_box, conff), targets,
                                ALPHA_GIOU, ALPHA_L1, ALPHA_CONF)
    return (box0, conf0, box1, conf1), losses, metrics


def multimodal_forward(params, input_dict):
    training = input_dict["training"]
    lang = input_dict.get("language", None)
    lang_mask = input_dict.get("language_mask", None)
    use_language = (lang is not None) and (lang_mask is not None)

    n = input_dict["search"].shape[0]
    block_b = _pick_batch_block(n, _num_tensorcores())

    preds, losses, metrics = _forward_core(
        params, input_dict["template"], input_dict["search"],
        input_dict["target"], lang, lang_mask,
        use_language=use_language, block_b=block_b)

    predictions = [(preds[0], preds[1]), (preds[2], preds[3])]
    if not training:
        return predictions

    total_loss = losses[0]
    # JAX scalars (no .item()/float() device->host syncs inside the hot path)
    loss_dict = {"giou": losses[1], "l1": losses[2], "conf": losses[3]}
    metric_dict = {"miou": metrics[0]}
    return total_loss, [loss_dict, metric_dict]


# ----------------------------------------------------------------------------
# deterministic parameter init (synthetic — no checkpoint loading)
# ----------------------------------------------------------------------------
def init_params(key):
    ks = jax.random.split(key, 8)

    def w(k, shape, scale=0.1):
        return (scale * jax.random.normal(k, shape)).astype(jnp.float32)

    t_len = ((16 + 2 * PAD - KSIZE) // STRIDE + 1) ** 2   # template H*W = 64
    return {
        "mean": jnp.array([0.485, 0.456, 0.406], jnp.float32),
        "std": jnp.array([0.229, 0.224, 0.225], jnp.float32),
        "conv_w": w(ks[0], (KSIZE * KSIZE * 3, C_FEAT)),
        "conv_b": jnp.zeros((1, C_FEAT), jnp.float32),
        "proj_w": w(ks[1], (t_len, C_FEAT)),
        "proj_b": jnp.zeros((1, C_FEAT), jnp.float32),
        "lang_w": w(ks[2], (LANG_D, C_FEAT)),
        "lang_b": jnp.zeros((1, C_FEAT), jnp.float32),
        "head_w1": w(ks[3], (C_FEAT, C_FEAT)),
        "head_w2": w(ks[4], (C_FEAT, C_FEAT)),
        "head_b": jnp.zeros((1, C_FEAT), jnp.float32),
        "box_w": w(ks[5], (C_FEAT, 4)),
        "box_b": jnp.zeros((1, 4), jnp.float32),
        "conf_w": w(ks[6], (C_FEAT, 1)),
        "conf_b": jnp.zeros((1, 1), jnp.float32),
    }


if __name__ == "__main__":
    key = jax.random.PRNGKey(0)
    k1, k2, k3, k4, k5 = jax.random.split(key, 5)
    N = 2
    template = jax.random.uniform(k1, (N, 3, 16, 16), jnp.float32, 0.0, 255.0)
    search = jax.random.uniform(k2, (N, 3, 16, 16), jnp.float32, 0.0, 255.0)
    xy = jax.random.uniform(k3, (N, 2), jnp.float32, 0.1, 0.4)
    wh = jax.random.uniform(k4, (N, 2), jnp.float32, 0.2, 0.4)
    target = jnp.concatenate([xy, xy + wh], axis=-1)      # (N, 4) xyxy in [0,1]
    lang = jax.random.normal(k5, (N, LANG_L, LANG_D), jnp.float32)
    lang_mask = jnp.array([[1.0] * LANG_L,
                           [1.0] * 5 + [0.0] * (LANG_L - 5)], jnp.float32)

    params = init_params(jax.random.PRNGKey(42))
    input_dict = {"training": True, "template": template, "search": search,
                  "target": target, "language": lang, "language_mask": lang_mask}

    # training path (with language)
    total_loss, (loss_dict, metric_dict) = multimodal_forward(params, input_dict)
    jax.block_until_ready((total_loss, loss_dict, metric_dict))
    assert bool(jnp.isfinite(total_loss)), "non-finite loss"

    # eval path (returns per-task head predictions, matching the reference)
    eval_preds = multimodal_forward(params, {**input_dict, "training": False})
    jax.block_until_ready(eval_preds)

    # eval path without language (lang/mask never touch the kernel)
    no_lang = {"training": False, "template": template, "search": search,
               "target": target}
    eval_preds_nl = multimodal_forward(params, no_lang)
    jax.block_until_ready(eval_preds_nl)

    print("KERNEL_OK")
</pallas_src>

<mosaic_0001>
module attributes {stable_mosaic.version = 11 : i64} {
  func.func @_fused_forward_kernel(%arg0: i32, %arg1: memref<256x27xbf16, #tpu.memory_space<vmem>>, %arg2: memref<2x8x32xf32, #tpu.memory_space<vmem>>, %arg3: memref<2x1x8xf32, #tpu.memory_space<vmem>>, %arg4: memref<27x32xbf16, #tpu.memory_space<vmem>>, %arg5: memref<1x32xf32, #tpu.memory_space<vmem>>, %arg6: memref<64x32xbf16, #tpu.memory_space<vmem>>, %arg7: memref<1x32xf32, #tpu.memory_space<vmem>>, %arg8: memref<32x32xf32, #tpu.memory_space<vmem>>, %arg9: memref<1x32xf32, #tpu.memory_space<vmem>>, %arg10: memref<32x32xbf16, #tpu.memory_space<vmem>>, %arg11: memref<32x32xbf16, #tpu.memory_space<vmem>>, %arg12: memref<1x32xf32, #tpu.memory_space<vmem>>, %arg13: memref<32x5xf32, #tpu.memory_space<vmem>>, %arg14: memref<1x5xf32, #tpu.memory_space<vmem>>, %arg15: memref<2x1x16xf32, #tpu.memory_space<vmem>>) attributes {dimension_semantics = [#tpu.dimension_semantics<parallel>], iteration_bounds = array<i64: 1>, scalar_prefetch = 0 : i64, scratch_operands = 0 : i64, tpu.core_type = #tpu.core_type<tc>, window_params = [{transform_indices = @transform_0, window_bounds = array<i64: 256, 27>}, {transform_indices = @transform_1, window_bounds = array<i64: 2, 8, 32>}, {transform_indices = @transform_2, window_bounds = array<i64: 2, 1, 8>}, {pipeline_mode = #tpu.pipeline_mode<synchronous>, transform_indices = @transform_3, window_bounds = array<i64: 27, 32>}, {pipeline_mode = #tpu.pipeline_mode<synchronous>, transform_indices = @transform_4, window_bounds = array<i64: 1, 32>}, {pipeline_mode = #tpu.pipeline_mode<synchronous>, transform_indices = @transform_5, window_bounds = array<i64: 64, 32>}, {pipeline_mode = #tpu.pipeline_mode<synchronous>, transform_indices = @transform_6, window_bounds = array<i64: 1, 32>}, {pipeline_mode = #tpu.pipeline_mode<synchronous>, transform_indices = @transform_7, window_bounds = array<i64: 32, 32>}, {pipeline_mode = #tpu.pipeline_mode<synchronous>, transform_indices = @transform_8, window_bounds = array<i64: 1, 32>}, {pipeline_mode = #tpu.pipeline_mode<synchronous>, transform_indices = @transform_9, window_bounds = array<i64: 32, 32>}, {pipeline_mode = #tpu.pipeline_mode<synchronous>, transform_indices = @transform_10, window_bounds = array<i64: 32, 32>}, {pipeline_mode = #tpu.pipeline_mode<synchronous>, transform_indices = @transform_11, window_bounds = array<i64: 1, 32>}, {pipeline_mode = #tpu.pipeline_mode<synchronous>, transform_indices = @transform_12, window_bounds = array<i64: 32, 5>}, {pipeline_mode = #tpu.pipeline_mode<synchronous>, transform_indices = @transform_13, window_bounds = array<i64: 1, 5>}, {transform_indices = @transform_14, window_bounds = array<i64: 2, 1, 16>}]} {
    %c0 = arith.constant 0 : index
    %c0_0 = arith.constant 0 : index
    %0 = vector.load %arg1[%c0, %c0_0] : memref<256x27xbf16, #tpu.memory_space<vmem>>, vector<256x27xbf16>
    %c0_1 = arith.constant 0 : index
    %c0_2 = arith.constant 0 : index
    %1 = vector.load %arg4[%c0_1, %c0_2] : memref<27x32xbf16, #tpu.memory_space<vmem>>, vector<27x32xbf16>
    %cst = arith.constant dense<0.000000e+00> : vector<256x32xf32>
    %2 = tpu.matmul %0, %1, %cst {dimension_numbers = #tpu.dot_dimension_numbers<[1], [0], [0], [1], [0, 0, 1, 1], [], []>} : vector<256x27xbf16>, vector<27x32xbf16>, vector<256x32xf32> -> vector<256x32xf32>
    %c0_3 = arith.constant 0 : index
    %c0_4 = arith.constant 0 : index
    %3 = vector.load %arg5[%c0_3, %c0_4] : memref<1x32xf32, #tpu.memory_space<vmem>>, vector<1x32xf32>
    %4 = vector.broadcast %3 : vector<1x32xf32> to vector<256x32xf32>
    %5 = arith.addf %2, %4 : vector<256x32xf32>
    %cst_5 = arith.constant 0.000000e+00 : f32
    %6 = vector.broadcast %cst_5 : f32 to vector<256x32xf32>
    %7 = arith.maximumf %5, %6 : vector<256x32xf32>
    %8 = vector.shape_cast %7 : vector<256x32xf32> to vector<2x128x32xf32>
    %9 = vector.extract_strided_slice %8 {offsets = [0, 0, 0], sizes = [2, 64, 32], strides = [1, 1, 1]} : vector<2x128x32xf32> to vector<2x64x32xf32>
    %10 = arith.truncf %9 : vector<2x64x32xf32> to vector<2x64x32xbf16>
    %11 = vector.extract_strided_slice %8 {offsets = [0, 64, 0], sizes = [2, 64, 32], strides = [1, 1, 1]} : vector<2x128x32xf32> to vector<2x64x32xf32>
    %12 = arith.truncf %11 : vector<2x64x32xf32> to vector<2x64x32xbf16>
    %c0_6 = arith.constant 0 : index
    %c0_7 = arith.constant 0 : index
    %c0_8 = arith.constant 0 : index
    %13 = vector.load %arg2[%c0_6, %c0_7, %c0_8] : memref<2x8x32xf32, #tpu.memory_space<vmem>>, vector<2x8x32xf32>
    %c0_9 = arith.constant 0 : index
    %c0_10 = arith.constant 0 : index
    %c0_11 = arith.constant 0 : index
    %14 = vector.load %arg3[%c0_9, %c0_10, %c0_11] : memref<2x1x8xf32, #tpu.memory_space<vmem>>, vector<2x1x8xf32>
    %15 = vector.shape_cast %14 : vector<2x1x8xf32> to vector<2x8xf32>
    %cst_12 = arith.constant dense<0.000000e+00> : vector<2xf32>
    %16 = vector.multi_reduction <add>, %15, %cst_12 [1] : vector<2x8xf32> to vector<2xf32>
    %17 = vector.shape_cast %16 : vector<2xf32> to vector<2x1xf32>
    %cst_13 = arith.constant 1.000000e+00 : f32
    %18 = vector.broadcast %cst_13 : f32 to vector<2x1xf32>
    %19 = arith.maximumf %17, %18 : vector<2x1xf32>
    %20 = vector.shape_cast %15 : vector<2x8xf32> to vector<2x8x1xf32>
    %21 = vector.broadcast %20 : vector<2x8x1xf32> to vector<2x8x32xf32>
    %22 = arith.mulf %21, %13 : vector<2x8x32xf32>
    %cst_14 = arith.constant dense<0.000000e+00> : vector<2x32xf32>
    %23 = vector.multi_reduction <add>, %22, %cst_14 [1] : vector<2x8x32xf32> to vector<2x32xf32>
    %24 = vector.broadcast %19 : vector<2x1xf32> to vector<2x32xf32>
    %25 = arith.divf %23, %24 : vector<2x32xf32>
    %c0_15 = arith.constant 0 : index
    %c0_16 = arith.constant 0 : index
    %26 = vector.load %arg8[%c0_15, %c0_16] : memref<32x32xf32, #tpu.memory_space<vmem>>, vector<32x32xf32>
    %cst_17 = arith.constant dense<0.000000e+00> : vector<2x32xf32>
    %27 = tpu.matmul %25, %26, %cst_17 {dimension_numbers = #tpu.dot_dimension_numbers<[1], [0], [0], [1], [0, 0, 1, 1], [], []>} : vector<2x32xf32>, vector<32x32xf32>, vector<2x32xf32> -> vector<2x32xf32>
    %c0_18 = arith.constant 0 : index
    %c0_19 = arith.constant 0 : index
    %28 = vector.load %arg9[%c0_18, %c0_19] : memref<1x32xf32, #tpu.memory_space<vmem>>, vector<1x32xf32>
    %29 = vector.broadcast %28 : vector<1x32xf32> to vector<2x32xf32>
    %30 = arith.addf %27, %29 : vector<2x32xf32>
    %31 = arith.negf %30 : vector<2x32xf32>
    %32 = math.exp %31 : vector<2x32xf32>
    %cst_20 = arith.constant 1.000000e+00 : f32
    %33 = vector.broadcast %cst_20 : f32 to vector<2x32xf32>
    %34 = arith.addf %33, %32 : vector<2x32xf32>
    %35 = arith.divf %33, %34 : vector<2x32xf32>
    %36 = vector.shape_cast %35 : vector<2x32xf32> to vector<2x1x32xf32>
    "tpu.trace_start"() <{level = 10 : i32, message = "bsc,btc->bst"}> : () -> ()
    %cst_21 = arith.constant dense<0.000000e+00> : vector<2x64x64xf32>
    %37 = tpu.matmul %12, %10, %cst_21 {dimension_numbers = #tpu.dot_dimension_numbers<[2], [2], [1], [1], [0, 0, 0, 1, 1, 1], [0], [0]>} : vector<2x64x32xbf16>, vector<2x64x32xbf16>, vector<2x64x64xf32> -> vector<2x64x64xf32>
    "tpu.trace_stop"() : () -> ()
    %cst_22 = arith.constant 0.176776692 : f32
    %38 = vector.broadcast %cst_22 : f32 to vector<2x64x64xf32>
    %39 = arith.mulf %37, %38 : vector<2x64x64xf32>
    %40 = arith.truncf %39 : vector<2x64x64xf32> to vector<2x64x64xbf16>
    %41 = vector.shape_cast %40 : vector<2x64x64xbf16> to vector<128x64xbf16>
    %c0_23 = arith.constant 0 : index
    %c0_24 = arith.constant 0 : index
    %42 = vector.load %arg6[%c0_23, %c0_24] : memref<64x32xbf16, #tpu.memory_space<vmem>>, vector<64x32xbf16>
    %cst_25 = arith.constant dense<0.000000e+00> : vector<128x32xf32>
    %43 = tpu.matmul %41, %42, %cst_25 {dimension_numbers = #tpu.dot_dimension_numbers<[1], [0], [0], [1], [0, 0, 1, 1], [], []>} : vector<128x64xbf16>, vector<64x32xbf16>, vector<128x32xf32> -> vector<128x32xf32>
    %c0_26 = arith.constant 0 : index
    %c0_27 = arith.constant 0 : index
    %44 = vector.load %arg7[%c0_26, %c0_27] : memref<1x32xf32, #tpu.memory_space<vmem>>, vector<1x32xf32>
    %45 = vector.broadcast %44 : vector<1x32xf32> to vector<128x32xf32>
    %46 = arith.addf %43, %45 : vector<128x32xf32>
    %cst_28 = arith.constant 0.000000e+00 : f32
    %47 = vector.broadcast %cst_28 : f32 to vector<128x32xf32>
    %48 = arith.maximumf %46, %47 : vector<128x32xf32>
    %49 = vector.shape_cast %48 : vector<128x32xf32> to vector<2x64x32xf32>
    %c0_29 = arith.constant 0 : index
    %c0_30 = arith.constant 0 : index
    %50 = vector.load %arg10[%c0_29, %c0_30] : memref<32x32xbf16, #tpu.memory_space<vmem>>, vector<32x32xbf16>
    %c0_31 = arith.constant 0 : index
    %c0_32 = arith.constant 0 : index
    %51 = vector.load %arg11[%c0_31, %c0_32] : memref<32x32xbf16, #tpu.memory_space<vmem>>, vector<32x32xbf16>
    %c0_33 = arith.constant 0 : index
    %c0_34 = arith.constant 0 : index
    %52 = vector.load %arg12[%c0_33, %c0_34] : memref<1x32xf32, #tpu.memory_space<vmem>>, vector<1x32xf32>
    %53 = arith.truncf %48 : vector<128x32xf32> to vector<128x32xbf16>
    %54 = vector.shape_cast %12 : vector<2x64x32xbf16> to vector<128x32xbf16>
    %cst_35 = arith.constant dense<0.000000e+00> : vector<128x32xf32>
    %55 = tpu.matmul %53, %50, %cst_35 {dimension_numbers = #tpu.dot_dimension_numbers<[1], [0], [0], [1], [0, 0, 1, 1], [], []>} : vector<128x32xbf16>, vector<32x32xbf16>, vector<128x32xf32> -> vector<128x32xf32>
    %cst_36 = arith.constant dense<0.000000e+00> : vector<128x32xf32>
    %56 = tpu.matmul %54, %51, %cst_36 {dimension_numbers = #tpu.dot_dimension_numbers<[1], [0], [0], [1], [0, 0, 1, 1], [], []>} : vector<128x32xbf16>, vector<32x32xbf16>, vector<128x32xf32> -> vector<128x32xf32>
    %57 = arith.addf %55, %56 : vector<128x32xf32>
    %58 = vector.broadcast %52 : vector<1x32xf32> to vector<128x32xf32>
    %59 = arith.addf %57, %58 : vector<128x32xf32>
    %60 = vector.broadcast %36 : vector<2x1x32xf32> to vector<2x64x32xf32>
    %61 = arith.mulf %11, %60 : vector<2x64x32xf32>
    %62 = arith.truncf %61 : vector<2x64x32xf32> to vector<2x64x32xbf16>
    %63 = vector.shape_cast %62 : vector<2x64x32xbf16> to vector<128x32xbf16>
    %64 = vector.broadcast %36 : vector<2x1x32xf32> to vector<2x64x32xf32>
    %65 = arith.mulf %49, %64 : vector<2x64x32xf32>
    %66 = arith.truncf %65 : vector<2x64x32xf32> to vector<2x64x32xbf16>
    %67 = vector.shape_cast %66 : vector<2x64x32xbf16> to vector<128x32xbf16>
    %cst_37 = arith.constant dense<0.000000e+00> : vector<128x32xf32>
    %68 = tpu.matmul %63, %50, %cst_37 {dimension_numbers = #tpu.dot_dimension_numbers<[1], [0], [0], [1], [0, 0, 1, 1], [], []>} : vector<128x32xbf16>, vector<32x32xbf16>, vector<128x32xf32> -> vector<128x32xf32>
    %cst_38 = arith.constant dense<0.000000e+00> : vector<128x32xf32>
    %69 = tpu.matmul %67, %51, %cst_38 {dimension_numbers = #tpu.dot_dimension_numbers<[1], [0], [0], [1], [0, 0, 1, 1], [], []>} : vector<128x32xbf16>, vector<32x32xbf16>, vector<128x32xf32> -> vector<128x32xf32>
    %70 = arith.addf %68, %69 : vector<128x32xf32>
    %71 = vector.broadcast %52 : vector<1x32xf32> to vector<128x32xf32>
    %72 = arith.addf %70, %71 : vector<128x32xf32>
    %cst_39 = arith.constant 0.000000e+00 : f32
    %73 = vector.broadcast %cst_39 : f32 to vector<128x32xf32>
    %74 = arith.maximumf %59, %73 : vector<128x32xf32>
    %75 = vector.shape_cast %74 : vector<128x32xf32> to vector<2x64x32xf32>
    %cst_40 = arith.constant dense<0.000000e+00> : vector<2x32xf32>
    %76 = vector.multi_reduction <add>, %75, %cst_40 [1] : vector<2x64x32xf32> to vector<2x32xf32>
    %cst_41 = arith.constant 6.400000e+01 : f32
    %77 = vector.broadcast %cst_41 : f32 to vector<2x32xf32>
    %78 = arith.divf %76, %77 : vector<2x32xf32>
    %cst_42 = arith.constant 0.000000e+00 : f32
    %79 = vector.broadcast %cst_42 : f32 to vector<128x32xf32>
    %80 = arith.maximumf %72, %79 : vector<128x32xf32>
    %81 = vector.shape_cast %80 : vector<128x32xf32> to vector<2x64x32xf32>
    %cst_43 = arith.constant dense<0.000000e+00> : vector<2x32xf32>
    %82 = vector.multi_reduction <add>, %81, %cst_43 [1] : vector<2x64x32xf32> to vector<2x32xf32>
    %cst_44 = arith.constant 6.400000e+01 : f32
    %83 = vector.broadcast %cst_44 : f32 to vector<2x32xf32>
    %84 = arith.divf %82, %83 : vector<2x32xf32>
    %c0_45 = arith.constant 0 : index
    %c0_46 = arith.constant 0 : index
    %85 = vector.load %arg13[%c0_45, %c0_46] : memref<32x5xf32, #tpu.memory_space<vmem>>, vector<32x5xf32>
    %c0_47 = arith.constant 0 : index
    %c0_48 = arith.constant 0 : index
    %86 = vector.load %arg14[%c0_47, %c0_48] : memref<1x5xf32, #tpu.memory_space<vmem>>, vector<1x5xf32>
    %cst_49 = arith.constant dense<0.000000e+00> : vector<2x5xf32>
    %87 = tpu.matmul %78, %85, %cst_49 {dimension_numbers = #tpu.dot_dimension_numbers<[1], [0], [0], [1], [0, 0, 1, 1], [], []>} : vector<2x32xf32>, vector<32x5xf32>, vector<2x5xf32> -> vector<2x5xf32>
    %88 = vector.broadcast %86 : vector<1x5xf32> to vector<2x5xf32>
    %89 = arith.addf %87, %88 : vector<2x5xf32>
    %cst_50 = arith.constant dense<0.000000e+00> : vector<2x5xf32>
    %90 = tpu.matmul %84, %85, %cst_50 {dimension_numbers = #tpu.dot_dimension_numbers<[1], [0], [0], [1], [0, 0, 1, 1], [], []>} : vector<2x32xf32>, vector<32x5xf32>, vector<2x5xf32> -> vector<2x5xf32>
    %91 = vector.broadcast %86 : vector<1x5xf32> to vector<2x5xf32>
    %92 = arith.addf %90, %91 : vector<2x5xf32>
    %93 = vector.extract_strided_slice %89 {offsets = [0, 0], sizes = [2, 4], strides = [1, 1]} : vector<2x5xf32> to vector<2x4xf32>
    %94 = arith.negf %93 : vector<2x4xf32>
    %95 = math.exp %94 : vector<2x4xf32>
    %cst_51 = arith.constant 1.000000e+00 : f32
    %96 = vector.broadcast %cst_51 : f32 to vector<2x4xf32>
    %97 = arith.addf %96, %95 : vector<2x4xf32>
    %98 = arith.divf %96, %97 : vector<2x4xf32>
    %99 = vector.extract_strided_slice %89 {offsets = [0, 4], sizes = [2, 1], strides = [1, 1]} : vector<2x5xf32> to vector<2x1xf32>
    %100 = vector.extract_strided_slice %92 {offsets = [0, 0], sizes = [2, 4], strides = [1, 1]} : vector<2x5xf32> to vector<2x4xf32>
    %101 = arith.negf %100 : vector<2x4xf32>
    %102 = math.exp %101 : vector<2x4xf32>
    %cst_52 = arith.constant 1.000000e+00 : f32
    %103 = vector.broadcast %cst_52 : f32 to vector<2x4xf32>
    %104 = arith.addf %103, %102 : vector<2x4xf32>
    %105 = arith.divf %103, %104 : vector<2x4xf32>
    %106 = vector.extract_strided_slice %92 {offsets = [0, 4], sizes = [2, 1], strides = [1, 1]} : vector<2x5xf32> to vector<2x1xf32>
    %107 = arith.maximumf %99, %106 : vector<2x1xf32>
    %108 = arith.subf %99, %107 : vector<2x1xf32>
    %109 = math.exp %108 : vector<2x1xf32>
    %110 = arith.subf %106, %107 : vector<2x1xf32>
    %111 = math.exp %110 : vector<2x1xf32>
    %112 = arith.addf %109, %111 : vector<2x1xf32>
    %cst_53 = arith.constant 1.000000e+00 : f32
    %113 = vector.broadcast %cst_53 : f32 to vector<2x1xf32>
    %114 = arith.divf %113, %112 : vector<2x1xf32>
    %115 = arith.mulf %109, %114 : vector<2x1xf32>
    %116 = vector.shape_cast %115 : vector<2x1xf32> to vector<2x1x1xf32>
    %117 = arith.mulf %111, %114 : vector<2x1xf32>
    %118 = vector.shape_cast %117 : vector<2x1xf32> to vector<2x1x1xf32>
    %119 = vector.shape_cast %59 : vector<128x32xf32> to vector<2x64x32xf32>
    %120 = vector.broadcast %116 : vector<2x1x1xf32> to vector<2x64x32xf32>
    %121 = arith.mulf %120, %119 : vector<2x64x32xf32>
    %122 = vector.shape_cast %72 : vector<128x32xf32> to vector<2x64x32xf32>
    %123 = vector.broadcast %118 : vector<2x1x1xf32> to vector<2x64x32xf32>
    %124 = arith.mulf %123, %122 : vector<2x64x32xf32>
    %125 = arith.addf %121, %124 : vector<2x64x32xf32>
    %cst_54 = arith.constant 0.000000e+00 : f32
    %126 = vector.broadcast %cst_54 : f32 to vector<2x64x32xf32>
    %127 = arith.maximumf %125, %126 : vector<2x64x32xf32>
    %cst_55 = arith.constant dense<0.000000e+00> : vector<2x32xf32>
    %128 = vector.multi_reduction <add>, %127, %cst_55 [1] : vector<2x64x32xf32> to vector<2x32xf32>
    %cst_56 = arith.constant 6.400000e+01 : f32
    %129 = vector.broadcast %cst_56 : f32 to vector<2x32xf32>
    %130 = arith.divf %128, %129 : vector<2x32xf32>
    %cst_57 = arith.constant dense<0.000000e+00> : vector<2x5xf32>
    %131 = tpu.matmul %130, %85, %cst_57 {dimension_numbers = #tpu.dot_dimension_numbers<[1], [0], [0], [1], [0, 0, 1, 1], [], []>} : vector<2x32xf32>, vector<32x5xf32>, vector<2x5xf32> -> vector<2x5xf32>
    %132 = vector.broadcast %86 : vector<1x5xf32> to vector<2x5xf32>
    %133 = arith.addf %131, %132 : vector<2x5xf32>
    %134 = vector.extract_strided_slice %133 {offsets = [0, 0], sizes = [2, 4], strides = [1, 1]} : vector<2x5xf32> to vector<2x4xf32>
    %135 = arith.negf %134 : vector<2x4xf32>
    %136 = math.exp %135 : vector<2x4xf32>
    %cst_58 = arith.constant 1.000000e+00 : f32
    %137 = vector.broadcast %cst_58 : f32 to vector<2x4xf32>
    %138 = arith.addf %137, %136 : vector<2x4xf32>
    %139 = arith.divf %137, %138 : vector<2x4xf32>
    %140 = vector.extract_strided_slice %133 {offsets = [0, 4], sizes = [2, 1], strides = [1, 1]} : vector<2x5xf32> to vector<2x1xf32>
    %cst_59 = arith.constant 0.000000e+00 : f32
    %141 = vector.broadcast %cst_59 : f32 to vector<2x1xf32>
    %142 = tpu.concatenate %98, %99, %105, %106, %139, %140, %141 in 1 : vector<2x4xf32>, vector<2x1xf32>, vector<2x4xf32>, vector<2x1xf32>, vector<2x4xf32>, vector<2x1xf32>, vector<2x1xf32> -> vector<2x16xf32>
    %143 = vector.shape_cast %142 : vector<2x16xf32> to vector<2x1x16xf32>
    %c0_60 = arith.constant 0 : index
    %c0_61 = arith.constant 0 : index
    %c0_62 = arith.constant 0 : index
    %144 = vector.load %arg15[%c0_60, %c0_61, %c0_62] : memref<2x1x16xf32, #tpu.memory_space<vmem>>, vector<2x1x16xf32>
    tpu.vector_store %arg15[%c0_60, %c0_61, %c0_62], %143 {strides = array<i32>} : memref<2x1x16xf32, #tpu.memory_space<vmem>>, vector<2x1x16xf32>,
    return
  }
  func.func @transform_0(%arg0: i32) -> (i32, i32) {
    %c0_i32 = arith.constant 0 : i32
    %c0_i32_0 = arith.constant 0 : i32
    return %arg0, %c0_i32 : i32, i32
  }
  func.func @transform_1(%arg0: i32) -> (i32, i32, i32) {
    %c0_i32 = arith.constant 0 : i32
    %c0_i32_0 = arith.constant 0 : i32
    %c0_i32_1 = arith.constant 0 : i32
    return %arg0, %c0_i32, %c0_i32_0 : i32, i32, i32
  }
  func.func @transform_2(%arg0: i32) -> (i32, i32, i32) {
    %c0_i32 = arith.constant 0 : i32
    %c0_i32_0 = arith.constant 0 : i32
    %c0_i32_1 = arith.constant 0 : i32
    return %arg0, %c0_i32, %c0_i32_0 : i32, i32, i32
  }
  func.func @transform_3(%arg0: i32) -> (i32, i32) {
    %c0_i32 = arith.constant 0 : i32
    %c0_i32_0 = arith.constant 0 : i32
    %c0_i32_1 = arith.constant 0 : i32
    return %c0_i32, %c0_i32_0 : i32, i32
  }
  func.func @transform_4(%arg0: i32) -> (i32, i32) {
    %c0_i32 = arith.constant 0 : i32
    %c0_i32_0 = arith.constant 0 : i32
    %c0_i32_1 = arith.constant 0 : i32
    return %c0_i32, %c0_i32_0 : i32, i32
  }
  func.func @transform_5(%arg0: i32) -> (i32, i32) {
    %c0_i32 = arith.constant 0 : i32
    %c0_i32_0 = arith.constant 0 : i32
    %c0_i32_1 = arith.constant 0 : i32
    return %c0_i32, %c0_i32_0 : i32, i32
  }
  func.func @transform_6(%arg0: i32) -> (i32, i32) {
    %c0_i32 = arith.constant 0 : i32
    %c0_i32_0 = arith.constant 0 : i32
    %c0_i32_1 = arith.constant 0 : i32
    return %c0_i32, %c0_i32_0 : i32, i32
  }
  func.func @transform_7(%arg0: i32) -> (i32, i32) {
    %c0_i32 = arith.constant 0 : i32
    %c0_i32_0 = arith.constant 0 : i32
    %c0_i32_1 = arith.constant 0 : i32
    return %c0_i32, %c0_i32_0 : i32, i32
  }
  func.func @transform_8(%arg0: i32) -> (i32, i32) {
    %c0_i32 = arith.constant 0 : i32
    %c0_i32_0 = arith.constant 0 : i32
    %c0_i32_1 = arith.constant 0 : i32
    return %c0_i32, %c0_i32_0 : i32, i32
  }
  func.func @transform_9(%arg0: i32) -> (i32, i32) {
    %c0_i32 = arith.constant 0 : i32
    %c0_i32_0 = arith.constant 0 : i32
    %c0_i32_1 = arith.constant 0 : i32
    return %c0_i32, %c0_i32_0 : i32, i32
  }
  func.func @transform_10(%arg0: i32) -> (i32, i32) {
    %c0_i32 = arith.constant 0 : i32
    %c0_i32_0 = arith.constant 0 : i32
    %c0_i32_1 = arith.constant 0 : i32
    return %c0_i32, %c0_i32_0 : i32, i32
  }
  func.func @transform_11(%arg0: i32) -> (i32, i32) {
    %c0_i32 = arith.constant 0 : i32
    %c0_i32_0 = arith.constant 0 : i32
    %c0_i32_1 = arith.constant 0 : i32
    return %c0_i32, %c0_i32_0 : i32, i32
  }
  func.func @transform_12(%arg0: i32) -> (i32, i32) {
    %c0_i32 = arith.constant 0 : i32
    %c0_i32_0 = arith.constant 0 : i32
    %c0_i32_1 = arith.constant 0 : i32
    return %c0_i32, %c0_i32_0 : i32, i32
  }
  func.func @transform_13(%arg0: i32) -> (i32, i32) {
    %c0_i32 = arith.constant 0 : i32
    %c0_i32_0 = arith.constant 0 : i32
    %c0_i32_1 = arith.constant 0 : i32
    return %c0_i32, %c0_i32_0 : i32, i32
  }
  func.func @transform_14(%arg0: i32) -> (i32, i32, i32) {
    %c0_i32 = arith.constant 0 : i32
    %c0_i32_0 = arith.constant 0 : i32
    %c0_i32_1 = arith.constant 0 : i32
    return %arg0, %c0_i32, %c0_i32_0 : i32, i32, i32
  }
}

</mosaic_0001>

<llo_original>
// kernel: tile.13
$region0: #{tile.13}
  #allocation0 [shape = 's32[1]{0}', space=sflag, size = 0x4, scoped, tag = 'scoped memory for tile.13']
  %s0 = inlined_call_operand.vmem [shape: f32[3], index: 0, kind: input, shape index: {}]
  %s1 = inlined_call_operand.vmem [shape: f32[9,3], index: 1, kind: output, shape index: {}]
  // Predicated region
  $region2: #{tile.13} parent=0 // pred_check
    _
  $region3: #{tile.13} parent=0 // pred_check_branch
    %3 = sbr.rel (0) target = $region5
  $region4: #{tile.13} parent=0 // pred_region
    _
  $region5: #{tile.13} parent=0 // pred_fallthru
    _
  %v4 = vld [vmem:[%s0] ss:$0 sm:$0xff]
  %5 = vst [vmem:[%s1] sm:$0xff] %v4
  %s6 = scalar_lea.vmem %s1, 8
  %7 = vst [vmem:[%s6] sm:$0xff] %v4

// kernel: mul.18
$region0: #{mul.18}
  %s0 = inlined_call_operand.vmem [shape: f32[9,3], index: 0, kind: input, shape index: {}]
  %s1 = inlined_call_operand.vmem [shape: f32[27], index: 1, kind: output, shape index: {}]
  $region1: #{mul.18} parent=0
    #allocation0 [shape = 'u8[4096]{0}', space=vmem, size = 0x1000, scoped, tag = 'scoped mem for output reshape']
    %v2 = vld [vmem:[%s0] sm:$0x1]
    %vm3 = vcmask 23552
    %4 = vst.msk [vmem:[#allocation0] sm:$0x1] %vm3, %v2
    %s5 = scalar_lea.vmem %s0, 8
    %v6 = vld [vmem:[%s5] sm:$0x1]
    %7 = vrot.lane.b32.xlu0 %v6, 24
    %v8 = vpop.permute.xlu0 %7
    %vm9 = vcmask 220352
    %10 = vst.msk [vmem:[#allocation0] sm:$0x1] %vm9, %v8
    %s11 = scalar_lea.vmem %s0, 7
    %v12 = vld [vmem:[%s11] sm:$0x1]
    %13 = vrot.lane.b32.xlu0 %v12, 21
    %v14 = vpop.permute.xlu0 %13
    %vm15 = vcmask 195752
    %16 = vst.msk [vmem:[#allocation0] sm:$0x1] %vm15, %v14
    %s17 = scalar_lea.vmem %s0, 6
    %v18 = vld [vmem:[%s17] sm:$0x1]
    %19 = vrot.lane.b32.xlu0 %v18, 18
    %v20 = vpop.permute.xlu0 %19
    %vm21 = vcmask 171152
    %22 = vst.msk [vmem:[#allocation0] sm:$0x1] %vm21, %v20
    %s23 = scalar_lea.vmem %s0, 5
    %v24 = vld [vmem:[%s23] sm:$0x1]
    %25 = vrot.lane.b32.xlu0 %v24, 15
    %v26 = vpop.permute.xlu0 %25
    %vm27 = vcmask 146552
    %28 = vst.msk [vmem:[#allocation0] sm:$0x1] %vm27, %v26
    %s29 = scalar_lea.vmem %s0, 4
    %v30 = vld [vmem:[%s29] sm:$0x1]
    %31 = vrot.lane.b32.xlu0 %v30, 12
    %v32 = vpop.permute.xlu0 %31
    %vm33 = vcmask 121952
    %34 = vst.msk [vmem:[#allocation0] sm:$0x1] %vm33, %v32
    %s35 = scalar_lea.vmem %s0, 3
    %v36 = vld [vmem:[%s35] sm:$0x1]
    %37 = vrot.lane.b32.xlu0 %v36, 9
    %v38 = vpop.permute.xlu0 %37
    %vm39 = vcmask 97352
    %40 = vst.msk [vmem:[#allocation0] sm:$0x1] %vm39, %v38
    %s41 = scalar_lea.vmem %s0, 2
    %v42 = vld [vmem:[%s41] sm:$0x1]
    %43 = vrot.lane.b32.xlu0 %v42, 6
    %v44 = vpop.permute.xlu0 %43
    %vm45 = vcmask 72752
    %46 = vst.msk [vmem:[#allocation0] sm:$0x1] %vm45, %v44
    %s47 = scalar_lea.vmem %s0, 1
    %v48 = vld [vmem:[%s47] sm:$0x1]
    %49 = vrot.lane.b32.xlu0 %v48, 3
    %v50 = vpop.permute.xlu0 %49
    %vm51 = vcmask 48152
    %52 = vst.msk [vmem:[#allocation0] sm:$0x1] %vm51, %v50
    %s54 = sshllo.u32 0, 1
    %v56 = vld [vmem:[#allocation0] sm:%s54]
    %s57 = sshllo.u32 0, 1
    %58 = vst [vmem:[%s1] sm:%s57] %v56

// kernel: _forward_core.1
$region0: #{_forward_core.1}
  #allocation0 [shape = 'u32[]', space=smem, size = 0x4, offset = 0x4, fixed_abs, tag = 'smem constant byte address 0x4 - core index']
  #allocation1 [shape = 'u32[144,128]{1,0:T(1,128)}', space=vmem, size = 0x12000, scoped, tag = 'internal scratch']
  %s0 = inlined_call_operand.vmem [shape: bf16[256,27], index: 0, kind: input, shape index: {}]
  %s1 = inlined_call_operand.vmem [shape: f32[2,8,32], index: 1, kind: input, shape index: {}]
  %s2 = inlined_call_operand.vmem [shape: f32[2,1,8], index: 2, kind: input, shape index: {}]
  %s3 = inlined_call_operand.vmem [shape: bf16[27,32], index: 3, kind: input, shape index: {}]
  %s4 = inlined_call_operand.vmem [shape: f32[1,32], index: 4, kind: input, shape index: {}]
  %s5 = inlined_call_operand.vmem [shape: bf16[64,32], index: 5, kind: input, shape index: {}]
  %s6 = inlined_call_operand.vmem [shape: f32[1,32], index: 6, kind: input, shape index: {}]
  %s7 = inlined_call_operand.vmem [shape: f32[32,32], index: 7, kind: input, shape index: {}]
  %s8 = inlined_call_operand.vmem [shape: f32[1,32], index: 8, kind: input, shape index: {}]
  %s9 = inlined_call_operand.vmem [shape: bf16[32,32], index: 9, kind: input, shape index: {}]
  %s10 = inlined_call_operand.vmem [shape: bf16[32,32], index: 10, kind: input, shape index: {}]
  %s11 = inlined_call_operand.vmem [shape: f32[1,32], index: 11, kind: input, shape index: {}]
  %s12 = inlined_call_operand.vmem [shape: f32[32,5], index: 12, kind: input, shape index: {}]
  %s13 = inlined_call_operand.vmem [shape: f32[1,5], index: 13, kind: input, shape index: {}]
  %s14 = inlined_call_operand.vmem [shape: f32[2,1,16], index: 14, kind: output, shape index: {}]
  %s15 = sld [smem:[#allocation0]]
  $region66: #{_forward_core.1} parent=0
    _
  %s17 = ssub.s32 1, %s15
  %s18 = scalar_select 0, %s17, %s15
  // Predicated region
  $region2: #{_forward_core.1} parent=0 // pred_check
    _
  $region3: #{_forward_core.1} parent=0 // pred_check_branch
    %20 = sbr.rel (0) target = $region5
  $region4: #{_forward_core.1} parent=0 // pred_region
    _
  $region5: #{_forward_core.1} parent=0 // pred_fallthru
    _
  // Predicated region
  $region6: #{_forward_core.1} parent=0 // pred_check
    _
  $region7: #{_forward_core.1} parent=0 // pred_check_branch
    %22 = sbr.rel (0) target = $region9
  $region8: #{_forward_core.1} parent=0 // pred_region
    _
  $region9: #{_forward_core.1} parent=0 // pred_fallthru
    _
  // Predicated region
  $region10: #{_forward_core.1} parent=0 // pred_check
    _
  $region11: #{_forward_core.1} parent=0 // pred_check_branch
    %24 = sbr.rel (0) target = $region13
  $region12: #{_forward_core.1} parent=0 // pred_region
    _
  $region13: #{_forward_core.1} parent=0 // pred_fallthru
    _
  // Predicated region
  $region14: #{_forward_core.1} parent=0 // pred_check
    _
  $region15: #{_forward_core.1} parent=0 // pred_check_branch
    %26 = sbr.rel (0) target = $region17
  $region16: #{_forward_core.1} parent=0 // pred_region
    _
  $region17: #{_forward_core.1} parent=0 // pred_fallthru
    _
  // Predicated region
  $region18: #{_forward_core.1} parent=0 // pred_check
    _
  $region19: #{_forward_core.1} parent=0 // pred_check_branch
    %28 = sbr.rel (0) target = $region21
  $region20: #{_forward_core.1} parent=0 // pred_region
    _
  $region21: #{_forward_core.1} parent=0 // pred_fallthru
    _
  // Predicated region
  $region22: #{_forward_core.1} parent=0 // pred_check
    _
  $region23: #{_forward_core.1} parent=0 // pred_check_branch
    %30 = sbr.rel (0) target = $region25
  $region24: #{_forward_core.1} parent=0 // pred_region
    _
  $region25: #{_forward_core.1} parent=0 // pred_fallthru
    _
  // Predicated region
  $region26: #{_forward_core.1} parent=0 // pred_check
    _
  $region27: #{_forward_core.1} parent=0 // pred_check_branch
    %32 = sbr.rel (0) target = $region29
  $region28: #{_forward_core.1} parent=0 // pred_region
    _
  $region29: #{_forward_core.1} parent=0 // pred_fallthru
    _
  // Predicated region
  $region30: #{_forward_core.1} parent=0 // pred_check
    _
  $region31: #{_forward_core.1} parent=0 // pred_check_branch
    %34 = sbr.rel (0) target = $region33
  $region32: #{_forward_core.1} parent=0 // pred_region
    _
  $region33: #{_forward_core.1} parent=0 // pred_fallthru
    _
  // Predicated region
  $region34: #{_forward_core.1} parent=0 // pred_check
    _
  $region35: #{_forward_core.1} parent=0 // pred_check_branch
    %36 = sbr.rel (0) target = $region37
  $region36: #{_forward_core.1} parent=0 // pred_region
    _
  $region37: #{_forward_core.1} parent=0 // pred_fallthru
    _
  // Predicated region
  $region38: #{_forward_core.1} parent=0 // pred_check
    _
  $region39: #{_forward_core.1} parent=0 // pred_check_branch
    %38 = sbr.rel (0) target = $region41
  $region40: #{_forward_core.1} parent=0 // pred_region
    _
  $region41: #{_forward_core.1} parent=0 // pred_fallthru
    _
  // Predicated region
  $region42: #{_forward_core.1} parent=0 // pred_check
    _
  $region43: #{_forward_core.1} parent=0 // pred_check_branch
    %40 = sbr.rel (0) target = $region45
  $region44: #{_forward_core.1} parent=0 // pred_region
    _
  $region45: #{_forward_core.1} parent=0 // pred_fallthru
    _
  // Predicated region
  $region46: #{_forward_core.1} parent=0 // pred_check
    _
  $region47: #{_forward_core.1} parent=0 // pred_check_branch
    %42 = sbr.rel (0) target = $region49
  $region48: #{_forward_core.1} parent=0 // pred_region
    _
  $region49: #{_forward_core.1} parent=0 // pred_fallthru
    _
  // Predicated region
  $region50: #{_forward_core.1} parent=0 // pred_check
    _
  $region51: #{_forward_core.1} parent=0 // pred_check_branch
    %44 = sbr.rel (0) target = $region53
  $region52: #{_forward_core.1} parent=0 // pred_region
    _
  $region53: #{_forward_core.1} parent=0 // pred_fallthru
    _
  // Predicated region
  $region54: #{_forward_core.1} parent=0 // pred_check
    _
  $region55: #{_forward_core.1} parent=0 // pred_check_branch
    %46 = sbr.rel (0) target = $region57
  $region56: #{_forward_core.1} parent=0 // pred_region
    _
  $region57: #{_forward_core.1} parent=0 // pred_fallthru
    _
  %v48 = vld [vmem:[%s0] sm:$0xf]
  %v49 = vld [vmem:[%s0 + $0x4] sm:$0xf]
  %v50 = vld [vmem:[%s0 + $0x8] sm:$0xf]
  %v51 = vld [vmem:[%s0 + $0xc] sm:$0xf]
  %v52 = vld [vmem:[%s0 + $0x10] sm:$0xf]
  %v53 = vld [vmem:[%s0 + $0x14] sm:$0xf]
  %v54 = vld [vmem:[%s0 + $0x18] sm:$0xf]
  %v55 = vld [vmem:[%s0 + $0x1c] sm:$0xf]
  %v56 = vld [vmem:[%s0 + $0x20] sm:$0xf]
  %v57 = vld [vmem:[%s0 + $0x24] sm:$0xf]
  %v58 = vld [vmem:[%s0 + $0x28] sm:$0xf]
  %v59 = vld [vmem:[%s0 + $0x2c] sm:$0xf]
  %v60 = vld [vmem:[%s0 + $0x30] sm:$0xf]
  %v61 = vld [vmem:[%s0 + $0x34] sm:$0xf]
  %v62 = vld [vmem:[%s0 + $0x38] sm:$0xf]
  %v63 = vld [vmem:[%s0 + $0x3c] sm:$0xf]
  %v64 = vld [vmem:[%s0 + $0x40] sm:$0xf]
  %v65 = vld [vmem:[%s0 + $0x44] sm:$0xf]
  %v66 = vld [vmem:[%s0 + $0x48] sm:$0xf]
  %v67 = vld [vmem:[%s0 + $0x4c] sm:$0xf]
  %v68 = vld [vmem:[%s0 + $0x50] sm:$0xf]
  %v69 = vld [vmem:[%s0 + $0x54] sm:$0xf]
  %v70 = vld [vmem:[%s0 + $0x58] sm:$0xf]
  %v71 = vld [vmem:[%s0 + $0x5c] sm:$0xf]
  %v72 = vld [vmem:[%s0 + $0x60] sm:$0xf]
  %v73 = vld [vmem:[%s0 + $0x64] sm:$0xf]
  %v74 = vld [vmem:[%s0 + $0x68] sm:$0xf]
  %v75 = vld [vmem:[%s0 + $0x6c] sm:$0xf]
  %v76 = vld [vmem:[%s0 + $0x70] sm:$0xf]
  %v77 = vld [vmem:[%s0 + $0x74] sm:$0xf]
  %v78 = vld [vmem:[%s0 + $0x78] sm:$0xf]
  %v79 = vld [vmem:[%s0 + $0x7c] sm:$0xf]
  %v80 = vld [vmem:[%s3] sm:$0xf]
  %v81 = vld [vmem:[%s3 + $0x4] sm:$0xf]
  %v82 = vld [vmem:[%s3 + $0x8] sm:$0xf]
  %v83 = vld [vmem:[%s3 + $0xc] sm:$0x3]
  %v84 = vld [vmem:[%s4] sm:$0x1]
  %v86 = vlaneseq
  %v87 = vshrl.u32 %v86, 7
  %v88 = vsub.s32 0, %v87
  %v89 = vrot.slane %v84, %v88
  %v123 = vunpack.c.l.b16 %v48
  %v124 = vunpack.c.l.b16 %v49
  %v125 = vunpack.c.l.b16 %v50
  %v126 = vunpack.c.l.b16 %v51
  %v127 = vunpack.c.l.b16 %v52
  %v128 = vunpack.c.l.b16 %v53
  %v129 = vunpack.c.l.b16 %v54
  %v130 = vunpack.c.l.b16 %v55
  %v131 = vunpack.c.l.b16 %v56
  %v132 = vunpack.c.l.b16 %v57
  %v133 = vunpack.c.l.b16 %v58
  %v134 = vunpack.c.l.b16 %v59
  %v135 = vunpack.c.l.b16 %v60
  %v136 = vunpack.c.l.b16 %v61
  %v137 = vunpack.c.l.b16 %v62
  %v138 = vunpack.c.l.b16 %v63
  %v139 = vunpack.c.l.b16 %v64
  %v140 = vunpack.c.l.b16 %v65
  %v141 = vunpack.c.l.b16 %v66
  %v142 = vunpack.c.l.b16 %v67
  %v143 = vunpack.c.l.b16 %v68
  %v144 = vunpack.c.l.b16 %v69
  %v145 = vunpack.c.l.b16 %v70
  %v146 = vunpack.c.l.b16 %v71
  %v147 = vunpack.c.l.b16 %v72
  %v148 = vunpack.c.l.b16 %v73
  %v149 = vunpack.c.l.b16 %v74
  %v150 = vunpack.c.l.b16 %v75
  %v151 = vunpack.c.l.b16 %v76
  %v152 = vunpack.c.l.b16 %v77
  %v153 = vunpack.c.l.b16 %v78
  %v154 = vunpack.c.l.b16 %v79
  %v155 = vpack.c.b16 %v124, %v123
  %v156 = vpack.c.b16 %v126, %v125
  %v157 = vpack.c.b16 %v128, %v127
  %v158 = vpack.c.b16 %v130, %v129
  %v159 = vpack.c.b16 %v132, %v131
  %v160 = vpack.c.b16 %v134, %v133
  %v161 = vpack.c.b16 %v136, %v135
  %v162 = vpack.c.b16 %v138, %v137
  %v163 = vpack.c.b16 %v140, %v139
  %v164 = vpack.c.b16 %v142, %v141
  %v165 = vpack.c.b16 %v144, %v143
  %v166 = vpack.c.b16 %v146, %v145
  %v167 = vpack.c.b16 %v148, %v147
  %v168 = vpack.c.b16 %v150, %v149
  %v169 = vpack.c.b16 %v152, %v151
  %v170 = vpack.c.b16 %v154, %v153
  %v175 = vunpack.c.l.b16 %v80
  %v176 = vunpack.c.l.b16 %v81
  %v177 = vunpack.c.l.b16 %v82
  %v178 = vunpack.c.l.b16 %v83
  %v179 = vpack.c.b16 %v176, %v175
  %v180 = vpack.c.b16 %v178, %v177
  %vm182 = vcmask 220160
  %v184 = vsel %vm182, %v155, 0
  %v187 = vsel %vm182, %v156, 0
  %v190 = vsel %vm182, %v157, 0
  %v193 = vsel %vm182, %v158, 0
  %v196 = vsel %vm182, %v159, 0
  %v199 = vsel %vm182, %v160, 0
  %v202 = vsel %vm182, %v161, 0
  %v205 = vsel %vm182, %v162, 0
  %v208 = vsel %vm182, %v163, 0
  %v211 = vsel %vm182, %v164, 0
  %v214 = vsel %vm182, %v165, 0
  %v217 = vsel %vm182, %v166, 0
  %v220 = vsel %vm182, %v167, 0
  %v223 = vsel %vm182, %v168, 0
  %v226 = vsel %vm182, %v169, 0
  %v229 = vsel %vm182, %v170, 0
  %vm231 = vcmask 1044480
  %vm232 = vcmask 1045504
  %v233 = vsel %vm231, 4294967295, 65535
  %v234 = vsel %vm232, %v233, 0
  %v236 = vand.u32 %v180, %v234
  %238 = vmatprep.subr.bf16.mxu0 0
  %239 = vmatpush1.bf16.msra.mxu0 %v179
  %240 = vmatprep.subr.bf16.mxu0 0
  %241 = vmatpush1.bf16.msra.mxu0 %v236
  %242 = vmatprep.subr.bf16.mxu0 0
  %243 = vmatpush1.bf16.msra.mxu0 0
  %244 = vmatprep.subr.bf16.mxu0 0
  %245 = vmatpush1.bf16.msra.mxu0 0
  %246 = vmatprep.subr.bf16.mxu0 0
  %247 = vmatpush1.bf16.msra.mxu0 0
  %248 = vmatprep.subr.bf16.mxu0 0
  %249 = vmatpush1.bf16.msra.mxu0 0
  %250 = vmatprep.subr.bf16.mxu0 0
  %251 = vmatpush1.bf16.msra.mxu0 0
  %252 = vmatprep.subr.bf16.mxu0 0
  %253 = vmatpush1.bf16.msra.mxu0 0
  %254 = vmatprep.subr.bf16.mxu0 0
  %255 = vmatpush1.bf16.msra.mxu0 0
  %256 = vmatprep.subr.bf16.mxu0 0
  %257 = vmatpush1.bf16.msra.mxu0 0
  %258 = vmatprep.subr.bf16.mxu0 0
  %259 = vmatpush1.bf16.msra.mxu0 0
  %260 = vmatprep.subr.bf16.mxu0 0
  %261 = vmatpush1.bf16.msra.mxu0 0
  %262 = vmatprep.subr.bf16.mxu0 0
  %263 = vmatpush1.bf16.msra.mxu0 0
  %264 = vmatprep.subr.bf16.mxu0 0
  %265 = vmatpush1.bf16.msra.mxu0 0
  %266 = vmatprep.subr.bf16.mxu0 0
  %267 = vmatpush1.bf16.msra.mxu0 0
  %268 = vmatprep.subr.bf16.mxu0 0
  %269 = vmatpush1.bf16.msra.mxu0 0
  %270 = vmatprep.mubr.bf16.mxu0 0
  %271 = vmatmul.mubr.bf16.gmra.mrb[0].mxu0 %v184
  %v272 = vpop.f32.mrb[0].mxu0
  %v273 = vadd.f32 %v89, %v272
  %v274 = vpop.f32.mrb[0].mxu0
  %v275 = vpop.f32.mrb[0].mxu0
  %v276 = vadd.f32 %v89, %v275
  %v277 = vpop.f32.mrb[0].mxu0
  %278 = vmatprep.mubr.bf16.mxu0 0
  %279 = vmatmul.mubr.bf16.gmra.mrb[0].mxu0 %v187
  %v280 = vpop.f32.mrb[0].mxu0
  %v281 = vadd.f32 %v89, %v280
  %v282 = vpop.f32.mrb[0].mxu0
  %v283 = vpop.f32.mrb[0].mxu0
  %v284 = vadd.f32 %v89, %v283
  %v285 = vpop.f32.mrb[0].mxu0
  %286 = vmatprep.mubr.bf16.mxu0 0
  %287 = vmatmul.mubr.bf16.gmra.mrb[0].mxu0 %v190
  %v288 = vpop.f32.mrb[0].mxu0
  %v289 = vadd.f32 %v89, %v288
  %v290 = vpop.f32.mrb[0].mxu0
  %v291 = vpop.f32.mrb[0].mxu0
  %v292 = vadd.f32 %v89, %v291
  %v293 = vpop.f32.mrb[0].mxu0
  %294 = vmatprep.mubr.bf16.mxu0 0
  %295 = vmatmul.mubr.bf16.gmra.mrb[0].mxu0 %v193
  %v296 = vpop.f32.mrb[0].mxu0
  %v297 = vadd.f32 %v89, %v296
  %v298 = vpop.f32.mrb[0].mxu0
  %v299 = vpop.f32.mrb[0].mxu0
  %v300 = vadd.f32 %v89, %v299
  %v301 = vpop.f32.mrb[0].mxu0
  %302 = vmatprep.mubr.bf16.mxu0 0
  %303 = vmatmul.mubr.bf16.gmra.mrb[0].mxu0 %v196
  %v304 = vpop.f32.mrb[0].mxu0
  %v305 = vadd.f32 %v89, %v304
  %v306 = vpop.f32.mrb[0].mxu0
  %v307 = vpop.f32.mrb[0].mxu0
  %v308 = vadd.f32 %v89, %v307
  %v309 = vpop.f32.mrb[0].mxu0
  %310 = vmatprep.mubr.bf16.mxu0 0
  %311 = vmatmul.mubr.bf16.gmra.mrb[0].mxu0 %v199
  %v312 = vpop.f32.mrb[0].mxu0
  %v313 = vadd.f32 %v89, %v312
  %v314 = vpop.f32.mrb[0].mxu0
  %v315 = vpop.f32.mrb[0].mxu0
  %v316 = vadd.f32 %v89, %v315
  %v317 = vpop.f32.mrb[0].mxu0
  %318 = vmatprep.mubr.bf16.mxu0 0
  %319 = vmatmul.mubr.bf16.gmra.mrb[0].mxu0 %v202
  %v320 = vpop.f32.mrb[0].mxu0
  %v321 = vadd.f32 %v89, %v320
  %v322 = vpop.f32.mrb[0].mxu0
  %v323 = vpop.f32.mrb[0].mxu0
  %v324 = vadd.f32 %v89, %v323
  %v325 = vpop.f32.mrb[0].mxu0
  %326 = vmatprep.mubr.bf16.mxu0 0
  %327 = vmatmul.mubr.bf16.gmra.mrb[0].mxu0 %v205
  %v328 = vpop.f32.mrb[0].mxu0
  %v329 = vadd.f32 %v89, %v328
  %v330 = vpop.f32.mrb[0].mxu0
  %v331 = vpop.f32.mrb[0].mxu0
  %v332 = vadd.f32 %v89, %v331
  %v333 = vpop.f32.mrb[0].mxu0
  %334 = vmatprep.mubr.bf16.mxu0 0
  %335 = vmatmul.mubr.bf16.gmra.mrb[0].mxu0 %v208
  %v336 = vpop.f32.mrb[0].mxu0
  %v337 = vadd.f32 %v89, %v336
  %v338 = vpop.f32.mrb[0].mxu0
  %v339 = vpop.f32.mrb[0].mxu0
  %v340 = vadd.f32 %v89, %v339
  %v341 = vpop.f32.mrb[0].mxu0
  %342 = vmatprep.mubr.bf16.mxu0 0
  %343 = vmatmul.mubr.bf16.gmra.mrb[0].mxu0 %v211
  %v344 = vpop.f32.mrb[0].mxu0
  %v345 = vadd.f32 %v89, %v344
  %v346 = vpop.f32.mrb[0].mxu0
  %v347 = vpop.f32.mrb[0].mxu0
  %v348 = vadd.f32 %v89, %v347
  %v349 = vpop.f32.mrb[0].mxu0
  %350 = vmatprep.mubr.bf16.mxu0 0
  %351 = vmatmul.mubr.bf16.gmra.mrb[0].mxu0 %v214
  %v352 = vpop.f32.mrb[0].mxu0
  %v353 = vadd.f32 %v89, %v352
  %v354 = vpop.f32.mrb[0].mxu0
  %v355 = vpop.f32.mrb[0].mxu0
  %v356 = vadd.f32 %v89, %v355
  %v357 = vpop.f32.mrb[0].mxu0
  %358 = vmatprep.mubr.bf16.mxu0 0
  %359 = vmatmul.mubr.bf16.gmra.mrb[0].mxu0 %v217
  %v360 = vpop.f32.mrb[0].mxu0
  %v361 = vadd.f32 %v89, %v360
  %v362 = vpop.f32.mrb[0].mxu0
  %v363 = vpop.f32.mrb[0].mxu0
  %v364 = vadd.f32 %v89, %v363
  %v365 = vpop.f32.mrb[0].mxu0
  %366 = vmatprep.mubr.bf16.mxu0 0
  %367 = vmatmul.mubr.bf16.gmra.mrb[0].mxu0 %v220
  %v368 = vpop.f32.mrb[0].mxu0
  %v369 = vadd.f32 %v89, %v368
  %v370 = vpop.f32.mrb[0].mxu0
  %v371 = vpop.f32.mrb[0].mxu0
  %v372 = vadd.f32 %v89, %v371
  %v373 = vpop.f32.mrb[0].mxu0
  %374 = vmatprep.mubr.bf16.mxu0 0
  %375 = vmatmul.mubr.bf16.gmra.mrb[0].mxu0 %v223
  %v376 = vpop.f32.mrb[0].mxu0
  %v377 = vadd.f32 %v89, %v376
  %v378 = vpop.f32.mrb[0].mxu0
  %v379 = vpop.f32.mrb[0].mxu0
  %v380 = vadd.f32 %v89, %v379
  %v381 = vpop.f32.mrb[0].mxu0
  %382 = vmatprep.mubr.bf16.mxu0 0
  %383 = vmatmul.mubr.bf16.gmra.mrb[0].mxu0 %v226
  %v384 = vpop.f32.mrb[0].mxu0
  %v385 = vadd.f32 %v89, %v384
  %v386 = vpop.f32.mrb[0].mxu0
  %v387 = vpop.f32.mrb[0].mxu0
  %v388 = vadd.f32 %v89, %v387
  %v389 = vpop.f32.mrb[0].mxu0
  %390 = vmatprep.mubr.bf16.mxu0 0
  %391 = vmatmul.mubr.bf16.gmra.mrb[0].mxu0 %v229
  %v392 = vpop.f32.mrb[0].mxu0
  %v393 = vadd.f32 %v89, %v392
  %v394 = vpop.f32.mrb[0].mxu0
  %v395 = vpop.f32.mrb[0].mxu0
  %v396 = vadd.f32 %v89, %v395
  %v397 = vpop.f32.mrb[0].mxu0
  %398 = vdwg.mxu0
  %v399 = vmax.f32 %v273, 0.0
  %v400 = vmax.f32 %v276, 0.0
  %v401 = vmax.f32 %v281, 0.0
  %v402 = vmax.f32 %v284, 0.0
  %v403 = vmax.f32 %v289, 0.0
  %v404 = vmax.f32 %v292, 0.0
  %v405 = vmax.f32 %v297, 0.0
  %v406 = vmax.f32 %v300, 0.0
  %v407 = vmax.f32 %v305, 0.0
  %v408 = vmax.f32 %v308, 0.0
  %v409 = vmax.f32 %v313, 0.0
  %v410 = vmax.f32 %v316, 0.0
  %v411 = vmax.f32 %v321, 0.0
  %v412 = vmax.f32 %v324, 0.0
  %v413 = vmax.f32 %v329, 0.0
  %v414 = vmax.f32 %v332, 0.0
  %v415 = vmax.f32 %v337, 0.0
  %v416 = vmax.f32 %v340, 0.0
  %v417 = vmax.f32 %v345, 0.0
  %v418 = vmax.f32 %v348, 0.0
  %v419 = vmax.f32 %v353, 0.0
  %v420 = vmax.f32 %v356, 0.0
  %v421 = vmax.f32 %v361, 0.0
  %v422 = vmax.f32 %v364, 0.0
  %v423 = vmax.f32 %v369, 0.0
  %v424 = vmax.f32 %v372, 0.0
  %v425 = vmax.f32 %v377, 0.0
  %v426 = vmax.f32 %v380, 0.0
  %v427 = vmax.f32 %v385, 0.0
  %v428 = vmax.f32 %v388, 0.0
  %v429 = vmax.f32 %v393, 0.0
  %v430 = vmax.f32 %v396, 0.0
  %v431 = vpack.c.bf16 %v400, %v399
  %v432 = vpack.c.bf16 %v402, %v401
  %v433 = vpack.c.bf16 %v404, %v403
  %v434 = vpack.c.bf16 %v406, %v405
  %v435 = vpack.c.bf16 %v416, %v415
  %v436 = vpack.c.bf16 %v418, %v417
  %v437 = vpack.c.bf16 %v420, %v419
  %v438 = vpack.c.bf16 %v422, %v421
  %v439 = vpack.c.bf16 %v408, %v407
  %v440 = vpack.c.bf16 %v410, %v409
  %v441 = vpack.c.bf16 %v412, %v411
  %v442 = vpack.c.bf16 %v414, %v413
  %v443 = vpack.c.bf16 %v424, %v423
  %v444 = vpack.c.bf16 %v426, %v425
  %v445 = vpack.c.bf16 %v428, %v427
  %v446 = vpack.c.bf16 %v430, %v429
  %v447 = vld [vmem:[%s1] sm:$0xff]
  %v448 = vld [vmem:[%s1 + $0x8] sm:$0xff]
  %v449 = vld [vmem:[%s2] sm:$0x1]
  %v450 = vld [vmem:[%s2 + $0x1] sm:$0x1]
  %v453 = vcombine.low %v449, %v450
  %v455 = vunpack.c.l.s4 1966171168
  %v456 = vunpack.c.0.s8 %v455
  %v457 = vlaneseq
  %v458 = vshrl.u32 %v457, 7
  %v459 = vsub.s32 %v456, %v458
  %v460 = vrot.slane %v453, %v459
  %v462 = vunpack.c.l.s4 1966171168
  %v463 = vunpack.c.0.s8 %v462
  %v464 = vlaneseq
  %v465 = vshrl.u32 %v464, 7
  %v466 = vsub.s32 %v463, %v465
  %v467 = vrot.slane %v460, %v466
  %vm469 = vcmask 58368
  %v470 = vsel %vm469, %v467, 0.0
  %471 = vadd.xlane.f32.xlu0 %v470
  %v472 = vpop.xlane.xlu0 %471
  %v473 = vmax.f32 %v472, 1.0
  %v474 = vlaneseq
  %v475 = vshrl.u32 %v474, 7
  %v476 = vsub.s32 0, %v475
  %v477 = vrot.slane %v449, %v476
  %479 = vbcast.lane.b32.xlu0 %v477, 256
  %v480 = vpop.permute.xlu0 %479
  %v481 = vlaneseq
  %v482 = vshrl.u32 %v481, 7
  %v483 = vsub.s32 0, %v482
  %v484 = vrot.slane %v450, %v483
  %486 = vbcast.lane.b32.xlu0 %v484, 256
  %v487 = vpop.permute.xlu0 %486
  %v488 = vmul.f32 %v480, %v447
  %v489 = vmul.f32 %v487, %v448
  %vm490 = vcmask 261120
  %v491 = vsel %vm490, %v488, 0.0
  %v492 = vrot.slane %v491, 4
  %v493 = vadd.f32 %v491, %v492
  %v494 = vrot.slane %v493, 2
  %v495 = vadd.f32 %v493, %v494
  %v496 = vrot.slane %v495, 1
  %v497 = vadd.f32 %v495, %v496
  %v498 = vsel %vm490, %v489, 0.0
  %v499 = vrot.slane %v498, 4
  %v500 = vadd.f32 %v498, %v499
  %v501 = vrot.slane %v500, 2
  %v502 = vadd.f32 %v500, %v501
  %v503 = vrot.slane %v502, 1
  %v504 = vadd.f32 %v502, %v503
  %v506 = vrot.slane %v473, 1
  %v509 = vrcp.pop %v473
  %v510 = vmul.f32 %v497, %v509
  %v511 = vrcp.pop %v506
  %v512 = vmul.f32 %v504, %v511
  %v513 = vld [vmem:[%s7] sm:$0xff]
  %v514 = vld [vmem:[%s7 + $0x8] sm:$0xff]
  %v515 = vld [vmem:[%s7 + $0x10] sm:$0xff]
  %v516 = vld [vmem:[%s7 + $0x18] sm:$0xff]
  %v517 = vld [vmem:[%s8] sm:$0x1]
  %v519 = vlaneseq
  %v520 = vshrl.u32 %v519, 7
  %v521 = vsub.s32 0, %v520
  %v522 = vrot.slane %v517, %v521
  %v526 = vrot.slane %v512, 7
  %vm527 = vcmask 1041409
  %v528 = vsel %vm527, %v526, %v510
  %v529 = vsel %vm490, %v528, 0
  %531 = vmatprep.subr.mxu0 0.0
  %532 = vmatpush1.msra.mxu0 %v513
  %533 = vmatprep.subr.mxu0 0.0
  %534 = vmatpush1.msra.mxu0 %v514
  %535 = vmatprep.subr.mxu0 0.0
  %536 = vmatpush1.msra.mxu0 %v515
  %537 = vmatprep.subr.mxu0 0.0
  %538 = vmatpush1.msra.mxu0 %v516
  %539 = vmatprep.subr.mxu0 0.0
  %540 = vmatpush1.msra.mxu0 0.0
  %541 = vmatprep.subr.mxu0 0.0
  %542 = vmatpush1.msra.mxu0 0.0
  %543 = vmatprep.subr.mxu0 0.0
  %544 = vmatpush1.msra.mxu0 0.0
  %545 = vmatprep.subr.mxu0 0.0
  %546 = vmatpush1.msra.mxu0 0.0
  %547 = vmatprep.subr.mxu0 0.0
  %548 = vmatpush1.msra.mxu0 0.0
  %549 = vmatprep.subr.mxu0 0.0
  %550 = vmatpush1.msra.mxu0 0.0
  %551 = vmatprep.subr.mxu0 0.0
  %552 = vmatpush1.msra.mxu0 0.0
  %553 = vmatprep.subr.mxu0 0.0
  %554 = vmatpush1.msra.mxu0 0.0
  %555 = vmatprep.subr.mxu0 0.0
  %556 = vmatpush1.msra.mxu0 0.0
  %557 = vmatprep.subr.mxu0 0.0
  %558 = vmatpush1.msra.mxu0 0.0
  %559 = vmatprep.subr.mxu0 0.0
  %560 = vmatpush1.msra.mxu0 0.0
  %561 = vmatprep.subr.mxu0 0.0
  %562 = vmatpush1.msra.mxu0 0.0
  %563 = vmatprep.subr.mxu0 0.0
  %564 = vmatpush1.msra.mxu0 0.0
  %565 = vmatprep.subr.mxu0 0.0
  %566 = vmatpush1.msra.mxu0 0.0
  %567 = vmatprep.subr.mxu0 0.0
  %568 = vmatpush1.msra.mxu0 0.0
  %569 = vmatprep.subr.mxu0 0.0
  %570 = vmatpush1.msra.mxu0 0.0
  %571 = vmatprep.subr.mxu0 0.0
  %572 = vmatpush1.msra.mxu0 0.0
  %573 = vmatprep.subr.mxu0 0.0
  %574 = vmatpush1.msra.mxu0 0.0
  %575 = vmatprep.subr.mxu0 0.0
  %576 = vmatpush1.msra.mxu0 0.0
  %577 = vmatprep.subr.mxu0 0.0
  %578 = vmatpush1.msra.mxu0 0.0
  %579 = vmatprep.subr.mxu0 0.0
  %580 = vmatpush1.msra.mxu0 0.0
  %581 = vmatprep.subr.mxu0 0.0
  %582 = vmatpush1.msra.mxu0 0.0
  %583 = vmatprep.subr.mxu0 0.0
  %584 = vmatpush1.msra.mxu0 0.0
  %585 = vmatprep.subr.mxu0 0.0
  %586 = vmatpush1.msra.mxu0 0.0
  %587 = vmatprep.subr.mxu0 0.0
  %588 = vmatpush1.msra.mxu0 0.0
  %589 = vmatprep.subr.mxu0 0.0
  %590 = vmatpush1.msra.mxu0 0.0
  %591 = vmatprep.subr.mxu0 0.0
  %592 = vmatpush1.msra.mxu0 0.0
  %593 = vmatprep.subr.mxu0 0.0
  %594 = vmatpush1.msra.mxu0 0.0
  %595 = vmatprep.mubr.f32.mxu0 0.0
  %596 = vmatmul.mubr.f32.gmra.mrb[0].mxu0 %v529
  %v597 = vpop.f32.mrb[0].mxu0
  %v598 = vadd.f32 %v522, %v597
  %v599 = vpop.f32.mrb[0].mxu0
  %600 = vdwg.mxu0
  %v601 = vxor.u32 %v598, 2147483648
  %v602 = vmul.f32 %v601, 1.442695
  %v603 = vpow.pop %v602
  %v604 = vadd.f32 %v603, 1.0
  %v605 = vrcp.pop %v604
  %v606 = vmul.f32 1.0, %v605
  %v609 = vunpack.c.l.s4 1966171168
  %v610 = vunpack.c.0.s8 %v609
  %v611 = vlaneseq
  %v612 = vshrl.u32 %v611, 7
  %v613 = vsub.s32 %v610, %v612
  %v614 = vrot.slane %v606, %v613
  %v615 = vcombine.high %v614, %v614
  %v617 = vunpack.c.l.s4 1966171168
  %v618 = vunpack.c.0.s8 %v617
  %v619 = vlaneseq
  %v620 = vshrl.u32 %v619, 7
  %v621 = vsub.s32 %v618, %v620
  %v622 = vrot.slane %v614, %v621
  %v624 = vunpack.c.l.s4 1966171168
  %v625 = vunpack.c.0.s8 %v624
  %v626 = vlaneseq
  %v627 = vshrl.u32 %v626, 7
  %v628 = vsub.s32 %v625, %v627
  %v629 = vrot.slane %v615, %v628
  %v631 = vsel %vm490, %v439, 0
  %v634 = vsel %vm490, %v440, 0
  %v637 = vsel %vm490, %v441, 0
  %v640 = vsel %vm490, %v442, 0
  %v643 = vsel %vm490, %v431, 0
  %v646 = vsel %vm490, %v432, 0
  %v649 = vsel %vm490, %v433, 0
  %v652 = vsel %vm490, %v434, 0
  %654 = vmatprep.subr.bf16.mxu0 0
  %655 = vmatpush1.bf16.xpose.msra.mxu0 %v643
  %656 = vmatprep.subr.bf16.mxu0 0
  %657 = vmatpush1.bf16.xpose.msra.mxu0 %v646
  %658 = vmatprep.subr.bf16.mxu0 0
  %659 = vmatpush1.bf16.xpose.msra.mxu0 %v649
  %660 = vmatprep.subr.bf16.mxu0 0
  %661 = vmatpush1.bf16.xpose.msra.mxu0 %v652
  %662 = vmatprep.subr.bf16.mxu0 0
  %663 = vmatpush1.bf16.xpose.msra.mxu0 0
  %664 = vmatprep.subr.bf16.mxu0 0
  %665 = vmatpush1.bf16.xpose.msra.mxu0 0
  %666 = vmatprep.subr.bf16.mxu0 0
  %667 = vmatpush1.bf16.xpose.msra.mxu0 0
  %668 = vmatprep.subr.bf16.mxu0 0
  %669 = vmatpush1.bf16.xpose.msra.mxu0 0
  %670 = vmatprep.subr.bf16.mxu0 0
  %671 = vmatpush1.bf16.xpose.msra.mxu0 0
  %672 = vmatprep.subr.bf16.mxu0 0
  %673 = vmatpush1.bf16.xpose.msra.mxu0 0
  %674 = vmatprep.subr.bf16.mxu0 0
  %675 = vmatpush1.bf16.xpose.msra.mxu0 0
  %676 = vmatprep.subr.bf16.mxu0 0
  %677 = vmatpush1.bf16.xpose.msra.mxu0 0
  %678 = vmatprep.subr.bf16.mxu0 0
  %679 = vmatpush1.bf16.xpose.msra.mxu0 0
  %680 = vmatprep.subr.bf16.mxu0 0
  %681 = vmatpush1.bf16.xpose.msra.mxu0 0
  %682 = vmatprep.subr.bf16.mxu0 0
  %683 = vmatpush1.bf16.xpose.msra.mxu0 0
  %684 = vmatprep.subr.bf16.mxu0 0
  %685 = vmatpush1.bf16.xpose.msra.mxu0 0
  %686 = vmatprep.mubr.bf16.mxu0 0
  %687 = vmatmul.mubr.bf16.gmra.mrb[0].mxu0 %v631
  %v688 = vpop.f32.mrb[0].mxu0
  %v689 = vadd.f32 0.0, %v688
  %v690 = vpop.f32.mrb[0].mxu0
  %v691 = vpop.f32.mrb[0].mxu0
  %v692 = vadd.f32 0.0, %v691
  %v693 = vpop.f32.mrb[0].mxu0
  %694 = vmatprep.mubr.bf16.mxu0 0
  %695 = vmatmul.mubr.bf16.gmra.mrb[0].mxu0 %v634
  %v696 = vpop.f32.mrb[0].mxu0
  %v697 = vadd.f32 0.0, %v696
  %v698 = vpop.f32.mrb[0].mxu0
  %v699 = vpop.f32.mrb[0].mxu0
  %v700 = vadd.f32 0.0, %v699
  %v701 = vpop.f32.mrb[0].mxu0
  %702 = vmatprep.mubr.bf16.mxu0 0
  %703 = vmatmul.mubr.bf16.gmra.mrb[0].mxu0 %v637
  %v704 = vpop.f32.mrb[0].mxu0
  %v705 = vadd.f32 0.0, %v704
  %v706 = vpop.f32.mrb[0].mxu0
  %v707 = vpop.f32.mrb[0].mxu0
  %v708 = vadd.f32 0.0, %v707
  %v709 = vpop.f32.mrb[0].mxu0
  %710 = vmatprep.mubr.bf16.mxu0 0
  %711 = vmatmul.mubr.bf16.gmra.mrb[0].mxu0 %v640
  %v712 = vpop.f32.mrb[0].mxu0
  %v713 = vadd.f32 0.0, %v712
  %v714 = vpop.f32.mrb[0].mxu0
  %v715 = vpop.f32.mrb[0].mxu0
  %v716 = vadd.f32 0.0, %v715
  %v717 = vpop.f32.mrb[0].mxu0
  %718 = vdwg.mxu0
  %v720 = vsel %vm490, %v443, 0
  %v723 = vsel %vm490, %v444, 0
  %v726 = vsel %vm490, %v445, 0
  %v729 = vsel %vm490, %v446, 0
  %v732 = vsel %vm490, %v435, 0
  %v735 = vsel %vm490, %v436, 0
  %v738 = vsel %vm490, %v437, 0
  %v741 = vsel %vm490, %v438, 0
  %743 = vmatprep.subr.bf16.mxu0 0
  %744 = vmatpush1.bf16.xpose.msra.mxu0 %v732
  %745 = vmatprep.subr.bf16.mxu0 0
  %746 = vmatpush1.bf16.xpose.msra.mxu0 %v735
  %747 = vmatprep.subr.bf16.mxu0 0
  %748 = vmatpush1.bf16.xpose.msra.mxu0 %v738
  %749 = vmatprep.subr.bf16.mxu0 0
  %750 = vmatpush1.bf16.xpose.msra.mxu0 %v741
  %751 = vmatprep.subr.bf16.mxu0 0
  %752 = vmatpush1.bf16.xpose.msra.mxu0 0
  %753 = vmatprep.subr.bf16.mxu0 0
  %754 = vmatpush1.bf16.xpose.msra.mxu0 0
  %755 = vmatprep.subr.bf16.mxu0 0
  %756 = vmatpush1.bf16.xpose.msra.mxu0 0
  %757 = vmatprep.subr.bf16.mxu0 0
  %758 = vmatpush1.bf16.xpose.msra.mxu0 0
  %759 = vmatprep.subr.bf16.mxu0 0
  %760 = vmatpush1.bf16.xpose.msra.mxu0 0
  %761 = vmatprep.subr.bf16.mxu0 0
  %762 = vmatpush1.bf16.xpose.msra.mxu0 0
  %763 = vmatprep.subr.bf16.mxu0 0
  %764 = vmatpush1.bf16.xpose.msra.mxu0 0
  %765 = vmatprep.subr.bf16.mxu0 0
  %766 = vmatpush1.bf16.xpose.msra.mxu0 0
  %767 = vmatprep.subr.bf16.mxu0 0
  %768 = vmatpush1.bf16.xpose.msra.mxu0 0
  %769 = vmatprep.subr.bf16.mxu0 0
  %770 = vmatpush1.bf16.xpose.msra.mxu0 0
  %771 = vmatprep.subr.bf16.mxu0 0
  %772 = vmatpush1.bf16.xpose.msra.mxu0 0
  %773 = vmatprep.subr.bf16.mxu0 0
  %774 = vmatpush1.bf16.xpose.msra.mxu0 0
  %775 = vmatprep.mubr.bf16.mxu0 0
  %776 = vmatmul.mubr.bf16.gmra.mrb[0].mxu0 %v720
  %v777 = vpop.f32.mrb[0].mxu0
  %v778 = vadd.f32 0.0, %v777
  %v779 = vpop.f32.mrb[0].mxu0
  %v780 = vpop.f32.mrb[0].mxu0
  %v781 = vadd.f32 0.0, %v780
  %v782 = vpop.f32.mrb[0].mxu0
  %783 = vmatprep.mubr.bf16.mxu0 0
  %784 = vmatmul.mubr.bf16.gmra.mrb[0].mxu0 %v723
  %v785 = vpop.f32.mrb[0].mxu0
  %v786 = vadd.f32 0.0, %v785
  %v787 = vpop.f32.mrb[0].mxu0
  %v788 = vpop.f32.mrb[0].mxu0
  %v789 = vadd.f32 0.0, %v788
  %v790 = vpop.f32.mrb[0].mxu0
  %791 = vmatprep.mubr.bf16.mxu0 0
  %792 = vmatmul.mubr.bf16.gmra.mrb[0].mxu0 %v726
  %v793 = vpop.f32.mrb[0].mxu0
  %v794 = vadd.f32 0.0, %v793
  %v795 = vpop.f32.mrb[0].mxu0
  %v796 = vpop.f32.mrb[0].mxu0
  %v797 = vadd.f32 0.0, %v796
  %v798 = vpop.f32.mrb[0].mxu0
  %799 = vmatprep.mubr.bf16.mxu0 0
  %800 = vmatmul.mubr.bf16.gmra.mrb[0].mxu0 %v729
  %v801 = vpop.f32.mrb[0].mxu0
  %v802 = vadd.f32 0.0, %v801
  %v803 = vpop.f32.mrb[0].mxu0
  %v804 = vpop.f32.mrb[0].mxu0
  %v805 = vadd.f32 0.0, %v804
  %v806 = vpop.f32.mrb[0].mxu0
  %807 = vdwg.mxu0
  %v808 = vmul.f32 %v689, 0.17677669
  %v809 = vmul.f32 %v692, 0.17677669
  %v810 = vmul.f32 %v697, 0.17677669
  %v811 = vmul.f32 %v700, 0.17677669
  %v812 = vmul.f32 %v705, 0.17677669
  %v813 = vmul.f32 %v708, 0.17677669
  %v814 = vmul.f32 %v713, 0.17677669
  %v815 = vmul.f32 %v716, 0.17677669
  %v816 = vmul.f32 %v778, 0.17677669
  %v817 = vmul.f32 %v781, 0.17677669
  %v818 = vmul.f32 %v786, 0.17677669
  %v819 = vmul.f32 %v789, 0.17677669
  %v820 = vmul.f32 %v794, 0.17677669
  %v821 = vmul.f32 %v797, 0.17677669
  %v822 = vmul.f32 %v802, 0.17677669
  %v823 = vmul.f32 %v805, 0.17677669
  %v824 = vpack.c.bf16 %v809, %v808
  %v825 = vpack.c.bf16 %v811, %v810
  %v826 = vpack.c.bf16 %v813, %v812
  %v827 = vpack.c.bf16 %v815, %v814
  %v828 = vpack.c.bf16 %v817, %v816
  %v829 = vpack.c.bf16 %v819, %v818
  %v830 = vpack.c.bf16 %v821, %v820
  %v831 = vpack.c.bf16 %v823, %v822
  %v832 = vld [vmem:[%s5] sm:$0xf]
  %v833 = vld [vmem:[%s5 + $0x4] sm:$0xf]
  %v834 = vld [vmem:[%s5 + $0x8] sm:$0xf]
  %v835 = vld [vmem:[%s5 + $0xc] sm:$0xf]
  %v836 = vld [vmem:[%s5 + $0x10] sm:$0xf]
  %v837 = vld [vmem:[%s5 + $0x14] sm:$0xf]
  %v838 = vld [vmem:[%s5 + $0x18] sm:$0xf]
  %v839 = vld [vmem:[%s5 + $0x1c] sm:$0xf]
  %v840 = vld [vmem:[%s6] sm:$0x1]
  %v842 = vlaneseq
  %v843 = vshrl.u32 %v842, 7
  %v844 = vsub.s32 0, %v843
  %v845 = vrot.slane %v840, %v844
  %v855 = vunpack.c.l.b16 %v832
  %v856 = vunpack.c.l.b16 %v833
  %v857 = vunpack.c.l.b16 %v834
  %v858 = vunpack.c.l.b16 %v835
  %v859 = vunpack.c.l.b16 %v836
  %v860 = vunpack.c.l.b16 %v837
  %v861 = vunpack.c.l.b16 %v838
  %v862 = vunpack.c.l.b16 %v839
  %v863 = vpack.c.b16 %v856, %v855
  %v864 = vpack.c.b16 %v858, %v857
  %v865 = vpack.c.b16 %v860, %v859
  %v866 = vpack.c.b16 %v862, %v861
  %vm871 = vcmask 523264
  %v873 = vsel %vm871, %v824, 0
  %v876 = vsel %vm871, %v825, 0
  %v879 = vsel %vm871, %v826, 0
  %v882 = vsel %vm871, %v827, 0
  %v885 = vsel %vm871, %v828, 0
  %v888 = vsel %vm871, %v829, 0
  %v891 = vsel %vm871, %v830, 0
  %v894 = vsel %vm871, %v831, 0
  %896 = vmatprep.subr.bf16.mxu0 0
  %897 = vmatpush1.bf16.msra.mxu0 %v863
  %898 = vmatprep.subr.bf16.mxu0 0
  %899 = vmatpush1.bf16.msra.mxu0 %v864
  %900 = vmatprep.subr.bf16.mxu0 0
  %901 = vmatpush1.bf16.msra.mxu0 %v865
  %902 = vmatprep.subr.bf16.mxu0 0
  %903 = vmatpush1.bf16.msra.mxu0 %v866
  %904 = vmatprep.subr.bf16.mxu0 0
  %905 = vmatpush1.bf16.msra.mxu0 0
  %906 = vmatprep.subr.bf16.mxu0 0
  %907 = vmatpush1.bf16.msra.mxu0 0
  %908 = vmatprep.subr.bf16.mxu0 0
  %909 = vmatpush1.bf16.msra.mxu0 0
  %910 = vmatprep.subr.bf16.mxu0 0
  %911 = vmatpush1.bf16.msra.mxu0 0
  %912 = vmatprep.subr.bf16.mxu0 0
  %913 = vmatpush1.bf16.msra.mxu0 0
  %914 = vmatprep.subr.bf16.mxu0 0
  %915 = vmatpush1.bf16.msra.mxu0 0
  %916 = vmatprep.subr.bf16.mxu0 0
  %917 = vmatpush1.bf16.msra.mxu0 0
  %918 = vmatprep.subr.bf16.mxu0 0
  %919 = vmatpush1.bf16.msra.mxu0 0
  %920 = vmatprep.subr.bf16.mxu0 0
  %921 = vmatpush1.bf16.msra.mxu0 0
  %922 = vmatprep.subr.bf16.mxu0 0
  %923 = vmatpush1.bf16.msra.mxu0 0
  %924 = vmatprep.subr.bf16.mxu0 0
  %925 = vmatpush1.bf16.msra.mxu0 0
  %926 = vmatprep.subr.bf16.mxu0 0
  %927 = vmatpush1.bf16.msra.mxu0 0
  %928 = vmatprep.mubr.bf16.mxu0 0
  %929 = vmatmul.mubr.bf16.gmra.mrb[0].mxu0 %v873
  %v930 = vpop.f32.mrb[0].mxu0
  %v931 = vadd.f32 %v845, %v930
  %v932 = vpop.f32.mrb[0].mxu0
  %v933 = vpop.f32.mrb[0].mxu0
  %v934 = vadd.f32 %v845, %v933
  %v935 = vpop.f32.mrb[0].mxu0
  %936 = vmatprep.mubr.bf16.mxu0 0
  %937 = vmatmul.mubr.bf16.gmra.mrb[0].mxu0 %v876
  %v938 = vpop.f32.mrb[0].mxu0
  %v939 = vadd.f32 %v845, %v938
  %v940 = vpop.f32.mrb[0].mxu0
  %v941 = vpop.f32.mrb[0].mxu0
  %v942 = vadd.f32 %v845, %v941
  %v943 = vpop.f32.mrb[0].mxu0
  %944 = vmatprep.mubr.bf16.mxu0 0
  %945 = vmatmul.mubr.bf16.gmra.mrb[0].mxu0 %v879
  %v946 = vpop.f32.mrb[0].mxu0
  %v947 = vadd.f32 %v845, %v946
  %v948 = vpop.f32.mrb[0].mxu0
  %v949 = vpop.f32.mrb[0].mxu0
  %v950 = vadd.f32 %v845, %v949
  %v951 = vpop.f32.mrb[0].mxu0
  %952 = vmatprep.mubr.bf16.mxu0 0
  %953 = vmatmul.mubr.bf16.gmra.mrb[0].mxu0 %v882
  %v954 = vpop.f32.mrb[0].mxu0
  %v955 = vadd.f32 %v845, %v954
  %v956 = vpop.f32.mrb[0].mxu0
  %v957 = vpop.f32.mrb[0].mxu0
  %v958 = vadd.f32 %v845, %v957
  %v959 = vpop.f32.mrb[0].mxu0
  %960 = vmatprep.mubr.bf16.mxu0 0
  %961 = vmatmul.mubr.bf16.gmra.mrb[0].mxu0 %v885
  %v962 = vpop.f32.mrb[0].mxu0
  %v963 = vadd.f32 %v845, %v962
  %v964 = vpop.f32.mrb[0].mxu0
  %v965 = vpop.f32.mrb[0].mxu0
  %v966 = vadd.f32 %v845, %v965
  %v967 = vpop.f32.mrb[0].mxu0
  %968 = vmatprep.mubr.bf16.mxu0 0
  %969 = vmatmul.mubr.bf16.gmra.mrb[0].mxu0 %v888
  %v970 = vpop.f32.mrb[0].mxu0
  %v971 = vadd.f32 %v845, %v970
  %v972 = vpop.f32.mrb[0].mxu0
  %v973 = vpop.f32.mrb[0].mxu0
  %v974 = vadd.f32 %v845, %v973
  %v975 = vpop.f32.mrb[0].mxu0
  %976 = vmatprep.mubr.bf16.mxu0 0
  %977 = vmatmul.mubr.bf16.gmra.mrb[0].mxu0 %v891
  %v978 = vpop.f32.mrb[0].mxu0
  %v979 = vadd.f32 %v845, %v978
  %v980 = vpop.f32.mrb[0].mxu0
  %v981 = vpop.f32.mrb[0].mxu0
  %v982 = vadd.f32 %v845, %v981
  %v983 = vpop.f32.mrb[0].mxu0
  %984 = vmatprep.mubr.bf16.mxu0 0
  %985 = vmatmul.mubr.bf16.gmra.mrb[0].mxu0 %v894
  %v986 = vpop.f32.mrb[0].mxu0
  %v987 = vadd.f32 %v845, %v986
  %v988 = vpop.f32.mrb[0].mxu0
  %v989 = vpop.f32.mrb[0].mxu0
  %v990 = vadd.f32 %v845, %v989
  %v991 = vpop.f32.mrb[0].mxu0
  %992 = vdwg.mxu0
  %v993 = vmax.f32 %v931, 0.0
  %v994 = vmax.f32 %v934, 0.0
  %v995 = vmax.f32 %v939, 0.0
  %v996 = vmax.f32 %v942, 0.0
  %v997 = vmax.f32 %v947, 0.0
  %v998 = vmax.f32 %v950, 0.0
  %v999 = vmax.f32 %v955, 0.0
  %v1000 = vmax.f32 %v958, 0.0
  %v1001 = vmax.f32 %v963, 0.0
  %v1002 = vmax.f32 %v966, 0.0
  %v1003 = vmax.f32 %v971, 0.0
  %v1004 = vmax.f32 %v974, 0.0
  %v1005 = vmax.f32 %v979, 0.0
  %v1006 = vmax.f32 %v982, 0.0
  %v1007 = vmax.f32 %v987, 0.0
  %v1008 = vmax.f32 %v990, 0.0
  %v1009 = vld [vmem:[%s9] sm:$0xf]
  %v1010 = vld [vmem:[%s9 + $0x4] sm:$0xf]
  %v1011 = vld [vmem:[%s9 + $0x8] sm:$0xf]
  %v1012 = vld [vmem:[%s9 + $0xc] sm:$0xf]
  %v1013 = vld [vmem:[%s10] sm:$0xf]
  %v1014 = vld [vmem:[%s10 + $0x4] sm:$0xf]
  %v1015 = vld [vmem:[%s10 + $0x8] sm:$0xf]
  %v1016 = vld [vmem:[%s10 + $0xc] sm:$0xf]
  %v1017 = vld [vmem:[%s11] sm:$0x1]
  %v1018 = vpack.c.bf16 %v994, %v993
  %v1019 = vpack.c.bf16 %v996, %v995
  %v1020 = vpack.c.bf16 %v998, %v997
  %v1021 = vpack.c.bf16 %v1000, %v999
  %v1022 = vpack.c.bf16 %v1002, %v1001
  %v1023 = vpack.c.bf16 %v1004, %v1003
  %v1024 = vpack.c.bf16 %v1006, %v1005
  %v1025 = vpack.c.bf16 %v1008, %v1007
  %v1030 = vunpack.c.l.b16 %v1013
  %v1031 = vunpack.c.l.b16 %v1014
  %v1032 = vunpack.c.l.b16 %v1015
  %v1033 = vunpack.c.l.b16 %v1016
  %v1034 = vpack.c.b16 %v1031, %v1030
  %v1035 = vpack.c.b16 %v1033, %v1032
  %1038 = vmatprep.subr.bf16.mxu0 0
  %1039 = vmatpush1.bf16.msra.mxu0 %v1034
  %1040 = vmatprep.subr.bf16.mxu0 0
  %1041 = vmatpush1.bf16.msra.mxu0 %v1035
  %1042 = vmatprep.subr.bf16.mxu0 0
  %1043 = vmatpush1.bf16.msra.mxu0 0
  %1044 = vmatprep.subr.bf16.mxu0 0
  %1045 = vmatpush1.bf16.msra.mxu0 0
  %1046 = vmatprep.subr.bf16.mxu0 0
  %1047 = vmatpush1.bf16.msra.mxu0 0
  %1048 = vmatprep.subr.bf16.mxu0 0
  %1049 = vmatpush1.bf16.msra.mxu0 0
  %1050 = vmatprep.subr.bf16.mxu0 0
  %1051 = vmatpush1.bf16.msra.mxu0 0
  %1052 = vmatprep.subr.bf16.mxu0 0
  %1053 = vmatpush1.bf16.msra.mxu0 0
  %1054 = vmatprep.subr.bf16.mxu0 0
  %1055 = vmatpush1.bf16.msra.mxu0 0
  %1056 = vmatprep.subr.bf16.mxu0 0
  %1057 = vmatpush1.bf16.msra.mxu0 0
  %1058 = vmatprep.subr.bf16.mxu0 0
  %1059 = vmatpush1.bf16.msra.mxu0 0
  %1060 = vmatprep.subr.bf16.mxu0 0
  %1061 = vmatpush1.bf16.msra.mxu0 0
  %1062 = vmatprep.subr.bf16.mxu0 0
  %1063 = vmatpush1.bf16.msra.mxu0 0
  %1064 = vmatprep.subr.bf16.mxu0 0
  %1065 = vmatpush1.bf16.msra.mxu0 0
  %1066 = vmatprep.subr.bf16.mxu0 0
  %1067 = vmatpush1.bf16.msra.mxu0 0
  %1068 = vmatprep.subr.bf16.mxu0 0
  %1069 = vmatpush1.bf16.msra.mxu0 0
  %1070 = vmatprep.mubr.bf16.mxu0 0
  %1071 = vmatmul.mubr.bf16.gmra.mrb[0].mxu0 %v631
  %v1072 = vpop.f32.mrb[0].mxu0
  %v1073 = vadd.f32 0.0, %v1072
  %v1074 = vpop.f32.mrb[0].mxu0
  %v1075 = vpop.f32.mrb[0].mxu0
  %v1076 = vadd.f32 0.0, %v1075
  %v1077 = vpop.f32.mrb[0].mxu0
  %1078 = vmatprep.mubr.bf16.mxu0 0
  %1079 = vmatmul.mubr.bf16.gmra.mrb[0].mxu0 %v634
  %v1080 = vpop.f32.mrb[0].mxu0
  %v1081 = vadd.f32 0.0, %v1080
  %v1082 = vpop.f32.mrb[0].mxu0
  %v1083 = vpop.f32.mrb[0].mxu0
  %v1084 = vadd.f32 0.0, %v1083
  %v1085 = vpop.f32.mrb[0].mxu0
  %1086 = vmatprep.mubr.bf16.mxu0 0
  %1087 = vmatmul.mubr.bf16.gmra.mrb[0].mxu0 %v637
  %v1088 = vpop.f32.mrb[0].mxu0
  %v1089 = vadd.f32 0.0, %v1088
  %v1090 = vpop.f32.mrb[0].mxu0
  %v1091 = vpop.f32.mrb[0].mxu0
  %v1092 = vadd.f32 0.0, %v1091
  %v1093 = vpop.f32.mrb[0].mxu0
  %1094 = vmatprep.mubr.bf16.mxu0 0
  %1095 = vmatmul.mubr.bf16.gmra.mrb[0].mxu0 %v640
  %v1096 = vpop.f32.mrb[0].mxu0
  %v1097 = vadd.f32 0.0, %v1096
  %v1098 = vpop.f32.mrb[0].mxu0
  %v1099 = vpop.f32.mrb[0].mxu0
  %v1100 = vadd.f32 0.0, %v1099
  %v1101 = vpop.f32.mrb[0].mxu0
  %1102 = vmatprep.mubr.bf16.mxu0 0
  %1103 = vmatmul.mubr.bf16.gmra.mrb[0].mxu0 %v720
  %v1104 = vpop.f32.mrb[0].mxu0
  %v1105 = vadd.f32 0.0, %v1104
  %v1106 = vpop.f32.mrb[0].mxu0
  %v1107 = vpop.f32.mrb[0].mxu0
  %v1108 = vadd.f32 0.0, %v1107
  %v1109 = vpop.f32.mrb[0].mxu0
  %1110 = vmatprep.mubr.bf16.mxu0 0
  %1111 = vmatmul.mubr.bf16.gmra.mrb[0].mxu0 %v723
  %v1112 = vpop.f32.mrb[0].mxu0
  %v1113 = vadd.f32 0.0, %v1112
  %v1114 = vpop.f32.mrb[0].mxu0
  %v1115 = vpop.f32.mrb[0].mxu0
  %v1116 = vadd.f32 0.0, %v1115
  %v1117 = vpop.f32.mrb[0].mxu0
  %1118 = vmatprep.mubr.bf16.mxu0 0
  %1119 = vmatmul.mubr.bf16.gmra.mrb[0].mxu0 %v726
  %v1120 = vpop.f32.mrb[0].mxu0
  %v1121 = vadd.f32 0.0, %v1120
  %v1122 = vpop.f32.mrb[0].mxu0
  %v1123 = vpop.f32.mrb[0].mxu0
  %v1124 = vadd.f32 0.0, %v1123
  %v1125 = vpop.f32.mrb[0].mxu0
  %1126 = vmatprep.mubr.bf16.mxu0 0
  %1127 = vmatmul.mubr.bf16.gmra.mrb[0].mxu0 %v729
  %v1128 = vpop.f32.mrb[0].mxu0
  %v1129 = vadd.f32 0.0, %v1128
  %v1130 = vpop.f32.mrb[0].mxu0
  %v1131 = vpop.f32.mrb[0].mxu0
  %v1132 = vadd.f32 0.0, %v1131
  %v1133 = vpop.f32.mrb[0].mxu0
  %1134 = vdwg.mxu0
  %v1139 = vunpack.c.l.b16 %v1009
  %v1140 = vunpack.c.l.b16 %v1010
  %v1141 = vunpack.c.l.b16 %v1011
  %v1142 = vunpack.c.l.b16 %v1012
  %v1143 = vpack.c.b16 %v1140, %v1139
  %v1144 = vpack.c.b16 %v1142, %v1141
  %v1148 = vsel %vm490, %v1018, 0
  %v1151 = vsel %vm490, %v1019, 0
  %v1154 = vsel %vm490, %v1020, 0
  %v1157 = vsel %vm490, %v1021, 0
  %v1160 = vsel %vm490, %v1022, 0
  %v1163 = vsel %vm490, %v1023, 0
  %v1166 = vsel %vm490, %v1024, 0
  %v1169 = vsel %vm490, %v1025, 0
  %1171 = vmatprep.subr.bf16.mxu0 0
  %1172 = vmatpush1.bf16.msra.mxu0 %v1143
  %1173 = vmatprep.subr.bf16.mxu0 0
  %1174 = vmatpush1.bf16.msra.mxu0 %v1144
  %1175 = vmatprep.subr.bf16.mxu0 0
  %1176 = vmatpush1.bf16.msra.mxu0 0
  %1177 = vmatprep.subr.bf16.mxu0 0
  %1178 = vmatpush1.bf16.msra.mxu0 0
  %1179 = vmatprep.subr.bf16.mxu0 0
  %1180 = vmatpush1.bf16.msra.mxu0 0
  %1181 = vmatprep.subr.bf16.mxu0 0
  %1182 = vmatpush1.bf16.msra.mxu0 0
  %1183 = vmatprep.subr.bf16.mxu0 0
  %1184 = vmatpush1.bf16.msra.mxu0 0
  %1185 = vmatprep.subr.bf16.mxu0 0
  %1186 = vmatpush1.bf16.msra.mxu0 0
  %1187 = vmatprep.subr.bf16.mxu0 0
  %1188 = vmatpush1.bf16.msra.mxu0 0
  %1189 = vmatprep.subr.bf16.mxu0 0
  %1190 = vmatpush1.bf16.msra.mxu0 0
  %1191 = vmatprep.subr.bf16.mxu0 0
  %1192 = vmatpush1.bf16.msra.mxu0 0
  %1193 = vmatprep.subr.bf16.mxu0 0
  %1194 = vmatpush1.bf16.msra.mxu0 0
  %1195 = vmatprep.subr.bf16.mxu0 0
  %1196 = vmatpush1.bf16.msra.mxu0 0
  %1197 = vmatprep.subr.bf16.mxu0 0
  %1198 = vmatpush1.bf16.msra.mxu0 0
  %1199 = vmatprep.subr.bf16.mxu0 0
  %1200 = vmatpush1.bf16.msra.mxu0 0
  %1201 = vmatprep.subr.bf16.mxu0 0
  %1202 = vmatpush1.bf16.msra.mxu0 0
  %1203 = vmatprep.mubr.bf16.mxu0 0
  %1204 = vmatmul.mubr.bf16.gmra.mrb[0].mxu0 %v1148
  %v1205 = vpop.f32.mrb[0].mxu0
  %v1206 = vadd.f32 %v1073, %v1205
  %v1207 = vpop.f32.mrb[0].mxu0
  %v1208 = vpop.f32.mrb[0].mxu0
  %v1209 = vadd.f32 %v1076, %v1208
  %v1210 = vpop.f32.mrb[0].mxu0
  %1211 = vmatprep.mubr.bf16.mxu0 0
  %1212 = vmatmul.mubr.bf16.gmra.mrb[0].mxu0 %v1151
  %v1213 = vpop.f32.mrb[0].mxu0
  %v1214 = vadd.f32 %v1081, %v1213
  %v1215 = vpop.f32.mrb[0].mxu0
  %v1216 = vpop.f32.mrb[0].mxu0
  %v1217 = vadd.f32 %v1084, %v1216
  %v1218 = vpop.f32.mrb[0].mxu0
  %1219 = vmatprep.mubr.bf16.mxu0 0
  %1220 = vmatmul.mubr.bf16.gmra.mrb[0].mxu0 %v1154
  %v1221 = vpop.f32.mrb[0].mxu0
  %v1222 = vadd.f32 %v1089, %v1221
  %v1223 = vpop.f32.mrb[0].mxu0
  %v1224 = vpop.f32.mrb[0].mxu0
  %v1225 = vadd.f32 %v1092, %v1224
  %v1226 = vpop.f32.mrb[0].mxu0
  %1227 = vmatprep.mubr.bf16.mxu0 0
  %1228 = vmatmul.mubr.bf16.gmra.mrb[0].mxu0 %v1157
  %v1229 = vpop.f32.mrb[0].mxu0
  %v1230 = vadd.f32 %v1097, %v1229
  %v1231 = vpop.f32.mrb[0].mxu0
  %v1232 = vpop.f32.mrb[0].mxu0
  %v1233 = vadd.f32 %v1100, %v1232
  %v1234 = vpop.f32.mrb[0].mxu0
  %1235 = vmatprep.mubr.bf16.mxu0 0
  %1236 = vmatmul.mubr.bf16.gmra.mrb[0].mxu0 %v1160
  %v1237 = vpop.f32.mrb[0].mxu0
  %v1238 = vadd.f32 %v1105, %v1237
  %v1239 = vpop.f32.mrb[0].mxu0
  %v1240 = vpop.f32.mrb[0].mxu0
  %v1241 = vadd.f32 %v1108, %v1240
  %v1242 = vpop.f32.mrb[0].mxu0
  %1243 = vmatprep.mubr.bf16.mxu0 0
  %1244 = vmatmul.mubr.bf16.gmra.mrb[0].mxu0 %v1163
  %v1245 = vpop.f32.mrb[0].mxu0
  %v1246 = vadd.f32 %v1113, %v1245
  %v1247 = vpop.f32.mrb[0].mxu0
  %v1248 = vpop.f32.mrb[0].mxu0
  %v1249 = vadd.f32 %v1116, %v1248
  %v1250 = vpop.f32.mrb[0].mxu0
  %1251 = vmatprep.mubr.bf16.mxu0 0
  %1252 = vmatmul.mubr.bf16.gmra.mrb[0].mxu0 %v1166
  %v1253 = vpop.f32.mrb[0].mxu0
  %v1254 = vadd.f32 %v1121, %v1253
  %v1255 = vpop.f32.mrb[0].mxu0
  %v1256 = vpop.f32.mrb[0].mxu0
  %v1257 = vadd.f32 %v1124, %v1256
  %v1258 = vpop.f32.mrb[0].mxu0
  %1259 = vmatprep.mubr.bf16.mxu0 0
  %1260 = vmatmul.mubr.bf16.gmra.mrb[0].mxu0 %v1169
  %v1261 = vpop.f32.mrb[0].mxu0
  %v1262 = vadd.f32 %v1129, %v1261
  %v1263 = vpop.f32.mrb[0].mxu0
  %v1264 = vpop.f32.mrb[0].mxu0
  %v1265 = vadd.f32 %v1132, %v1264
  %v1266 = vpop.f32.mrb[0].mxu0
  %1267 = vdwg.mxu0
  %v1269 = vlaneseq
  %v1270 = vshrl.u32 %v1269, 7
  %v1271 = vsub.s32 0, %v1270
  %v1272 = vrot.slane %v1017, %v1271
  %v1274 = vadd.f32 %v1206, %v1272
  %v1275 = vadd.f32 %v1209, %v1272
  %v1276 = vadd.f32 %v1214, %v1272
  %v1277 = vadd.f32 %v1217, %v1272
  %v1278 = vadd.f32 %v1222, %v1272
  %v1279 = vadd.f32 %v1225, %v1272
  %v1280 = vadd.f32 %v1230, %v1272
  %v1281 = vadd.f32 %v1233, %v1272
  %v1282 = vadd.f32 %v1238, %v1272
  %v1283 = vadd.f32 %v1241, %v1272
  %v1284 = vadd.f32 %v1246, %v1272
  %v1285 = vadd.f32 %v1249, %v1272
  %v1286 = vadd.f32 %v1254, %v1272
  %v1287 = vadd.f32 %v1257, %v1272
  %v1288 = vadd.f32 %v1262, %v1272
  %v1289 = vadd.f32 %v1265, %v1272
  %v1290 = vlaneseq
  %v1291 = vshrl.u32 %v1290, 7
  %v1292 = vsub.s32 0, %v1291
  %v1293 = vrot.slane %v622, %v1292
  %v1294 = vlaneseq
  %v1295 = vshrl.u32 %v1294, 7
  %v1296 = vsub.s32 0, %v1295
  %v1297 = vrot.slane %v629, %v1296
  %v1300 = vmul.f32 %v407, %v1293
  %v1301 = vmul.f32 %v408, %v1293
  %v1302 = vmul.f32 %v409, %v1293
  %v1303 = vmul.f32 %v410, %v1293
  %v1304 = vmul.f32 %v411, %v1293
  %v1305 = vmul.f32 %v412, %v1293
  %v1306 = vmul.f32 %v413, %v1293
  %v1307 = vmul.f32 %v414, %v1293
  %v1308 = vmul.f32 %v423, %v1297
  %v1309 = vmul.f32 %v424, %v1297
  %v1310 = vmul.f32 %v425, %v1297
  %v1311 = vmul.f32 %v426, %v1297
  %v1312 = vmul.f32 %v427, %v1297
  %v1313 = vmul.f32 %v428, %v1297
  %v1314 = vmul.f32 %v429, %v1297
  %v1315 = vmul.f32 %v430, %v1297
  %v1316 = vpack.c.bf16 %v1301, %v1300
  %v1317 = vpack.c.bf16 %v1303, %v1302
  %v1318 = vpack.c.bf16 %v1305, %v1304
  %v1319 = vpack.c.bf16 %v1307, %v1306
  %v1320 = vpack.c.bf16 %v1309, %v1308
  %v1321 = vpack.c.bf16 %v1311, %v1310
  %v1322 = vpack.c.bf16 %v1313, %v1312
  %v1323 = vpack.c.bf16 %v1315, %v1314
  %v1324 = vmul.f32 %v993, %v1293
  %v1325 = vmul.f32 %v994, %v1293
  %v1326 = vmul.f32 %v995, %v1293
  %v1327 = vmul.f32 %v996, %v1293
  %v1328 = vmul.f32 %v997, %v1293
  %v1329 = vmul.f32 %v998, %v1293
  %v1330 = vmul.f32 %v999, %v1293
  %v1331 = vmul.f32 %v1000, %v1293
  %v1332 = vmul.f32 %v1001, %v1297
  %v1333 = vmul.f32 %v1002, %v1297
  %v1334 = vmul.f32 %v1003, %v1297
  %v1335 = vmul.f32 %v1004, %v1297
  %v1336 = vmul.f32 %v1005, %v1297
  %v1337 = vmul.f32 %v1006, %v1297
  %v1338 = vmul.f32 %v1007, %v1297
  %v1339 = vmul.f32 %v1008, %v1297
  %v1340 = vpack.c.bf16 %v1325, %v1324
  %v1341 = vpack.c.bf16 %v1327, %v1326
  %v1342 = vpack.c.bf16 %v1329, %v1328
  %v1343 = vpack.c.bf16 %v1331, %v1330
  %v1344 = vpack.c.bf16 %v1333, %v1332
  %v1345 = vpack.c.bf16 %v1335, %v1334
  %v1346 = vpack.c.bf16 %v1337, %v1336
  %v1347 = vpack.c.bf16 %v1339, %v1338
  %v1349 = vsel %vm490, %v1340, 0
  %v1352 = vsel %vm490, %v1341, 0
  %v1355 = vsel %vm490, %v1342, 0
  %v1358 = vsel %vm490, %v1343, 0
  %v1361 = vsel %vm490, %v1344, 0
  %v1364 = vsel %vm490, %v1345, 0
  %v1367 = vsel %vm490, %v1346, 0
  %v1370 = vsel %vm490, %v1347, 0
  %1372 = vmatprep.subr.bf16.mxu0 0
  %1373 = vmatpush1.bf16.msra.mxu0 %v1034
  %1374 = vmatprep.subr.bf16.mxu0 0
  %1375 = vmatpush1.bf16.msra.mxu0 %v1035
  %1376 = vmatprep.subr.bf16.mxu0 0
  %1377 = vmatpush1.bf16.msra.mxu0 0
  %1378 = vmatprep.subr.bf16.mxu0 0
  %1379 = vmatpush1.bf16.msra.mxu0 0
  %1380 = vmatprep.subr.bf16.mxu0 0
  %1381 = vmatpush1.bf16.msra.mxu0 0
  %1382 = vmatprep.subr.bf16.mxu0 0
  %1383 = vmatpush1.bf16.msra.mxu0 0
  %1384 = vmatprep.subr.bf16.mxu0 0
  %1385 = vmatpush1.bf16.msra.mxu0 0
  %1386 = vmatprep.subr.bf16.mxu0 0
  %1387 = vmatpush1.bf16.msra.mxu0 0
  %1388 = vmatprep.subr.bf16.mxu0 0
  %1389 = vmatpush1.bf16.msra.mxu0 0
  %1390 = vmatprep.subr.bf16.mxu0 0
  %1391 = vmatpush1.bf16.msra.mxu0 0
  %1392 = vmatprep.subr.bf16.mxu0 0
  %1393 = vmatpush1.bf16.msra.mxu0 0
  %1394 = vmatprep.subr.bf16.mxu0 0
  %1395 = vmatpush1.bf16.msra.mxu0 0
  %1396 = vmatprep.subr.bf16.mxu0 0
  %1397 = vmatpush1.bf16.msra.mxu0 0
  %1398 = vmatprep.subr.bf16.mxu0 0
  %1399 = vmatpush1.bf16.msra.mxu0 0
  %1400 = vmatprep.subr.bf16.mxu0 0
  %1401 = vmatpush1.bf16.msra.mxu0 0
  %1402 = vmatprep.subr.bf16.mxu0 0
  %1403 = vmatpush1.bf16.msra.mxu0 0
  %1404 = vmatprep.mubr.bf16.mxu0 0
  %1405 = vmatmul.mubr.bf16.gmra.mrb[0].mxu0 %v1349
  %v1406 = vpop.f32.mrb[0].mxu0
  %v1407 = vadd.f32 0.0, %v1406
  %v1408 = vpop.f32.mrb[0].mxu0
  %v1409 = vpop.f32.mrb[0].mxu0
  %v1410 = vadd.f32 0.0, %v1409
  %v1411 = vpop.f32.mrb[0].mxu0
  %1412 = vmatprep.mubr.bf16.mxu0 0
  %1413 = vmatmul.mubr.bf16.gmra.mrb[0].mxu0 %v1352
  %v1414 = vpop.f32.mrb[0].mxu0
  %v1415 = vadd.f32 0.0, %v1414
  %v1416 = vpop.f32.mrb[0].mxu0
  %v1417 = vpop.f32.mrb[0].mxu0
  %v1418 = vadd.f32 0.0, %v1417
  %v1419 = vpop.f32.mrb[0].mxu0
  %1420 = vmatprep.mubr.bf16.mxu0 0
  %1421 = vmatmul.mubr.bf16.gmra.mrb[0].mxu0 %v1355
  %v1422 = vpop.f32.mrb[0].mxu0
  %v1423 = vadd.f32 0.0, %v1422
  %v1424 = vpop.f32.mrb[0].mxu0
  %v1425 = vpop.f32.mrb[0].mxu0
  %v1426 = vadd.f32 0.0, %v1425
  %v1427 = vpop.f32.mrb[0].mxu0
  %1428 = vmatprep.mubr.bf16.mxu0 0
  %1429 = vmatmul.mubr.bf16.gmra.mrb[0].mxu0 %v1358
  %v1430 = vpop.f32.mrb[0].mxu0
  %v1431 = vadd.f32 0.0, %v1430
  %v1432 = vpop.f32.mrb[0].mxu0
  %v1433 = vpop.f32.mrb[0].mxu0
  %v1434 = vadd.f32 0.0, %v1433
  %v1435 = vpop.f32.mrb[0].mxu0
  %1436 = vmatprep.mubr.bf16.mxu0 0
  %1437 = vmatmul.mubr.bf16.gmra.mrb[0].mxu0 %v1361
  %v1438 = vpop.f32.mrb[0].mxu0
  %v1439 = vadd.f32 0.0, %v1438
  %v1440 = vpop.f32.mrb[0].mxu0
  %v1441 = vpop.f32.mrb[0].mxu0
  %v1442 = vadd.f32 0.0, %v1441
  %v1443 = vpop.f32.mrb[0].mxu0
  %1444 = vmatprep.mubr.bf16.mxu0 0
  %1445 = vmatmul.mubr.bf16.gmra.mrb[0].mxu0 %v1364
  %v1446 = vpop.f32.mrb[0].mxu0
  %v1447 = vadd.f32 0.0, %v1446
  %v1448 = vpop.f32.mrb[0].mxu0
  %v1449 = vpop.f32.mrb[0].mxu0
  %v1450 = vadd.f32 0.0, %v1449
  %v1451 = vpop.f32.mrb[0].mxu0
  %1452 = vmatprep.mubr.bf16.mxu0 0
  %1453 = vmatmul.mubr.bf16.gmra.mrb[0].mxu0 %v1367
  %v1454 = vpop.f32.mrb[0].mxu0
  %v1455 = vadd.f32 0.0, %v1454
  %v1456 = vpop.f32.mrb[0].mxu0
  %v1457 = vpop.f32.mrb[0].mxu0
  %v1458 = vadd.f32 0.0, %v1457
  %v1459 = vpop.f32.mrb[0].mxu0
  %1460 = vmatprep.mubr.bf16.mxu0 0
  %1461 = vmatmul.mubr.bf16.gmra.mrb[0].mxu0 %v1370
  %v1462 = vpop.f32.mrb[0].mxu0
  %v1463 = vadd.f32 0.0, %v1462
  %v1464 = vpop.f32.mrb[0].mxu0
  %v1465 = vpop.f32.mrb[0].mxu0
  %v1466 = vadd.f32 0.0, %v1465
  %v1467 = vpop.f32.mrb[0].mxu0
  %1468 = vdwg.mxu0
  %v1470 = vsel %vm490, %v1316, 0
  %v1473 = vsel %vm490, %v1317, 0
  %v1476 = vsel %vm490, %v1318, 0
  %v1479 = vsel %vm490, %v1319, 0
  %v1482 = vsel %vm490, %v1320, 0
  %v1485 = vsel %vm490, %v1321, 0
  %v1488 = vsel %vm490, %v1322, 0
  %v1491 = vsel %vm490, %v1323, 0
  %1493 = vmatprep.subr.bf16.mxu0 0
  %1494 = vmatpush1.bf16.msra.mxu0 %v1143
  %1495 = vmatprep.subr.bf16.mxu0 0
  %1496 = vmatpush1.bf16.msra.mxu0 %v1144
  %1497 = vmatprep.subr.bf16.mxu0 0
  %1498 = vmatpush1.bf16.msra.mxu0 0
  %1499 = vmatprep.subr.bf16.mxu0 0
  %1500 = vmatpush1.bf16.msra.mxu0 0
  %1501 = vmatprep.subr.bf16.mxu0 0
  %1502 = vmatpush1.bf16.msra.mxu0 0
  %1503 = vmatprep.subr.bf16.mxu0 0
  %1504 = vmatpush1.bf16.msra.mxu0 0
  %1505 = vmatprep.subr.bf16.mxu0 0
  %1506 = vmatpush1.bf16.msra.mxu0 0
  %1507 = vmatprep.subr.bf16.mxu0 0
  %1508 = vmatpush1.bf16.msra.mxu0 0
  %1509 = vmatprep.subr.bf16.mxu0 0
  %1510 = vmatpush1.bf16.msra.mxu0 0
  %1511 = vmatprep.subr.bf16.mxu0 0
  %1512 = vmatpush1.bf16.msra.mxu0 0
  %1513 = vmatprep.subr.bf16.mxu0 0
  %1514 = vmatpush1.bf16.msra.mxu0 0
  %1515 = vmatprep.subr.bf16.mxu0 0
  %1516 = vmatpush1.bf16.msra.mxu0 0
  %1517 = vmatprep.subr.bf16.mxu0 0
  %1518 = vmatpush1.bf16.msra.mxu0 0
  %1519 = vmatprep.subr.bf16.mxu0 0
  %1520 = vmatpush1.bf16.msra.mxu0 0
  %1521 = vmatprep.subr.bf16.mxu0 0
  %1522 = vmatpush1.bf16.msra.mxu0 0
  %1523 = vmatprep.subr.bf16.mxu0 0
  %1524 = vmatpush1.bf16.msra.mxu0 0
  %1525 = vmatprep.mubr.bf16.mxu0 0
  %1526 = vmatmul.mubr.bf16.gmra.mrb[0].mxu0 %v1470
  %v1527 = vpop.f32.mrb[0].mxu0
  %v1528 = vadd.f32 %v1407, %v1527
  %v1529 = vpop.f32.mrb[0].mxu0
  %v1530 = vpop.f32.mrb[0].mxu0
  %v1531 = vadd.f32 %v1410, %v1530
  %v1532 = vpop.f32.mrb[0].mxu0
  %1533 = vmatprep.mubr.bf16.mxu0 0
  %1534 = vmatmul.mubr.bf16.gmra.mrb[0].mxu0 %v1473
  %v1535 = vpop.f32.mrb[0].mxu0
  %v1536 = vadd.f32 %v1415, %v1535
  %v1537 = vpop.f32.mrb[0].mxu0
  %v1538 = vpop.f32.mrb[0].mxu0
  %v1539 = vadd.f32 %v1418, %v1538
  %v1540 = vpop.f32.mrb[0].mxu0
  %1541 = vmatprep.mubr.bf16.mxu0 0
  %1542 = vmatmul.mubr.bf16.gmra.mrb[0].mxu0 %v1476
  %v1543 = vpop.f32.mrb[0].mxu0
  %v1544 = vadd.f32 %v1423, %v1543
  %v1545 = vpop.f32.mrb[0].mxu0
  %v1546 = vpop.f32.mrb[0].mxu0
  %v1547 = vadd.f32 %v1426, %v1546
  %v1548 = vpop.f32.mrb[0].mxu0
  %1549 = vmatprep.mubr.bf16.mxu0 0
  %1550 = vmatmul.mubr.bf16.gmra.mrb[0].mxu0 %v1479
  %v1551 = vpop.f32.mrb[0].mxu0
  %v1552 = vadd.f32 %v1431, %v1551
  %v1553 = vpop.f32.mrb[0].mxu0
  %v1554 = vpop.f32.mrb[0].mxu0
  %v1555 = vadd.f32 %v1434, %v1554
  %v1556 = vpop.f32.mrb[0].mxu0
  %1557 = vmatprep.mubr.bf16.mxu0 0
  %1558 = vmatmul.mubr.bf16.gmra.mrb[0].mxu0 %v1482
  %v1559 = vpop.f32.mrb[0].mxu0
  %v1560 = vadd.f32 %v1439, %v1559
  %v1561 = vpop.f32.mrb[0].mxu0
  %v1562 = vpop.f32.mrb[0].mxu0
  %v1563 = vadd.f32 %v1442, %v1562
  %v1564 = vpop.f32.mrb[0].mxu0
  %1565 = vmatprep.mubr.bf16.mxu0 0
  %1566 = vmatmul.mubr.bf16.gmra.mrb[0].mxu0 %v1485
  %v1567 = vpop.f32.mrb[0].mxu0
  %v1568 = vadd.f32 %v1447, %v1567
  %v1569 = vpop.f32.mrb[0].mxu0
  %v1570 = vpop.f32.mrb[0].mxu0
  %v1571 = vadd.f32 %v1450, %v1570
  %v1572 = vpop.f32.mrb[0].mxu0
  %1573 = vmatprep.mubr.bf16.mxu0 0
  %1574 = vmatmul.mubr.bf16.gmra.mrb[0].mxu0 %v1488
  %v1575 = vpop.f32.mrb[0].mxu0
  %v1576 = vadd.f32 %v1455, %v1575
  %v1577 = vpop.f32.mrb[0].mxu0
  %v1578 = vpop.f32.mrb[0].mxu0
  %v1579 = vadd.f32 %v1458, %v1578
  %v1580 = vpop.f32.mrb[0].mxu0
  %1581 = vmatprep.mubr.bf16.mxu0 0
  %1582 = vmatmul.mubr.bf16.gmra.mrb[0].mxu0 %v1491
  %v1583 = vpop.f32.mrb[0].mxu0
  %v1584 = vadd.f32 %v1463, %v1583
  %v1585 = vpop.f32.mrb[0].mxu0
  %v1586 = vpop.f32.mrb[0].mxu0
  %v1587 = vadd.f32 %v1466, %v1586
  %v1588 = vpop.f32.mrb[0].mxu0
  %1589 = vdwg.mxu0
  %v1590 = vadd.f32 %v1528, %v1272
  %v1591 = vadd.f32 %v1531, %v1272
  %v1592 = vadd.f32 %v1536, %v1272
  %v1593 = vadd.f32 %v1539, %v1272
  %v1594 = vadd.f32 %v1544, %v1272
  %v1595 = vadd.f32 %v1547, %v1272
  %v1596 = vadd.f32 %v1552, %v1272
  %v1597 = vadd.f32 %v1555, %v1272
  %v1598 = vadd.f32 %v1560, %v1272
  %v1599 = vadd.f32 %v1563, %v1272
  %v1600 = vadd.f32 %v1568, %v1272
  %v1601 = vadd.f32 %v1571, %v1272
  %v1602 = vadd.f32 %v1576, %v1272
  %v1603 = vadd.f32 %v1579, %v1272
  %v1604 = vadd.f32 %v1584, %v1272
  %v1605 = vadd.f32 %v1587, %v1272
  %v1606 = vmax.f32 %v1274, 0.0
  %v1607 = vmax.f32 %v1275, 0.0
  %v1608 = vmax.f32 %v1276, 0.0
  %v1609 = vmax.f32 %v1277, 0.0
  %v1610 = vmax.f32 %v1278, 0.0
  %v1611 = vmax.f32 %v1279, 0.0
  %v1612 = vmax.f32 %v1280, 0.0
  %v1613 = vmax.f32 %v1281, 0.0
  %v1614 = vmax.f32 %v1282, 0.0
  %v1615 = vmax.f32 %v1283, 0.0
  %v1616 = vmax.f32 %v1284, 0.0
  %v1617 = vmax.f32 %v1285, 0.0
  %v1618 = vmax.f32 %v1286, 0.0
  %v1619 = vmax.f32 %v1287, 0.0
  %v1620 = vmax.f32 %v1288, 0.0
  %v1621 = vmax.f32 %v1289, 0.0
  %v1622 = vsel %vm490, %v1606, 0.0
  %v1623 = vsel %vm490, %v1607, 0.0
  %v1624 = vadd.f32 %v1622, %v1623
  %v1625 = vsel %vm490, %v1608, 0.0
  %v1626 = vadd.f32 %v1624, %v1625
  %v1627 = vsel %vm490, %v1609, 0.0
  %v1628 = vadd.f32 %v1626, %v1627
  %v1629 = vsel %vm490, %v1610, 0.0
  %v1630 = vadd.f32 %v1628, %v1629
  %v1631 = vsel %vm490, %v1611, 0.0
  %v1632 = vadd.f32 %v1630, %v1631
  %v1633 = vsel %vm490, %v1612, 0.0
  %v1634 = vadd.f32 %v1632, %v1633
  %v1635 = vsel %vm490, %v1613, 0.0
  %v1636 = vadd.f32 %v1634, %v1635
  %v1637 = vrot.slane %v1636, 4
  %v1638 = vadd.f32 %v1636, %v1637
  %v1639 = vrot.slane %v1638, 2
  %v1640 = vadd.f32 %v1638, %v1639
  %v1641 = vrot.slane %v1640, 1
  %v1642 = vadd.f32 %v1640, %v1641
  %v1643 = vsel %vm490, %v1614, 0.0
  %v1644 = vsel %vm490, %v1615, 0.0
  %v1645 = vadd.f32 %v1643, %v1644
  %v1646 = vsel %vm490, %v1616, 0.0
  %v1647 = vadd.f32 %v1645, %v1646
  %v1648 = vsel %vm490, %v1617, 0.0
  %v1649 = vadd.f32 %v1647, %v1648
  %v1650 = vsel %vm490, %v1618, 0.0
  %v1651 = vadd.f32 %v1649, %v1650
  %v1652 = vsel %vm490, %v1619, 0.0
  %v1653 = vadd.f32 %v1651, %v1652
  %v1654 = vsel %vm490, %v1620, 0.0
  %v1655 = vadd.f32 %v1653, %v1654
  %v1656 = vsel %vm490, %v1621, 0.0
  %v1657 = vadd.f32 %v1655, %v1656
  %v1658 = vrot.slane %v1657, 4
  %v1659 = vadd.f32 %v1657, %v1658
  %v1660 = vrot.slane %v1659, 2
  %v1661 = vadd.f32 %v1659, %v1660
  %v1662 = vrot.slane %v1661, 1
  %v1663 = vadd.f32 %v1661, %v1662
  %v1664 = vrcp.pop 64.0
  %v1665 = vmul.f32 %v1642, %v1664
  %v1666 = vmul.f32 %v1663, %v1664
  %v1667 = vmax.f32 %v1590, 0.0
  %v1668 = vmax.f32 %v1591, 0.0
  %v1669 = vmax.f32 %v1592, 0.0
  %v1670 = vmax.f32 %v1593, 0.0
  %v1671 = vmax.f32 %v1594, 0.0
  %v1672 = vmax.f32 %v1595, 0.0
  %v1673 = vmax.f32 %v1596, 0.0
  %v1674 = vmax.f32 %v1597, 0.0
  %v1675 = vmax.f32 %v1598, 0.0
  %v1676 = vmax.f32 %v1599, 0.0
  %v1677 = vmax.f32 %v1600, 0.0
  %v1678 = vmax.f32 %v1601, 0.0
  %v1679 = vmax.f32 %v1602, 0.0
  %v1680 = vmax.f32 %v1603, 0.0
  %v1681 = vmax.f32 %v1604, 0.0
  %v1682 = vmax.f32 %v1605, 0.0
  %v1683 = vsel %vm490, %v1667, 0.0
  %v1684 = vsel %vm490, %v1668, 0.0
  %v1685 = vadd.f32 %v1683, %v1684
  %v1686 = vsel %vm490, %v1669, 0.0
  %v1687 = vadd.f32 %v1685, %v1686
  %v1688 = vsel %vm490, %v1670, 0.0
  %v1689 = vadd.f32 %v1687, %v1688
  %v1690 = vsel %vm490, %v1671, 0.0
  %v1691 = vadd.f32 %v1689, %v1690
  %v1692 = vsel %vm490, %v1672, 0.0
  %v1693 = vadd.f32 %v1691, %v1692
  %v1694 = vsel %vm490, %v1673, 0.0
  %v1695 = vadd.f32 %v1693, %v1694
  %v1696 = vsel %vm490, %v1674, 0.0
  %v1697 = vadd.f32 %v1695, %v1696
  %v1698 = vrot.slane %v1697, 4
  %v1699 = vadd.f32 %v1697, %v1698
  %v1700 = vrot.slane %v1699, 2
  %v1701 = vadd.f32 %v1699, %v1700
  %v1702 = vrot.slane %v1701, 1
  %v1703 = vadd.f32 %v1701, %v1702
  %v1704 = vsel %vm490, %v1675, 0.0
  %v1705 = vsel %vm490, %v1676, 0.0
  %v1706 = vadd.f32 %v1704, %v1705
  %v1707 = vsel %vm490, %v1677, 0.0
  %v1708 = vadd.f32 %v1706, %v1707
  %v1709 = vsel %vm490, %v1678, 0.0
  %v1710 = vadd.f32 %v1708, %v1709
  %v1711 = vsel %vm490, %v1679, 0.0
  %v1712 = vadd.f32 %v1710, %v1711
  %v1713 = vsel %vm490, %v1680, 0.0
  %v1714 = vadd.f32 %v1712, %v1713
  %v1715 = vsel %vm490, %v1681, 0.0
  %v1716 = vadd.f32 %v1714, %v1715
  %v1717 = vsel %vm490, %v1682, 0.0
  %v1718 = vadd.f32 %v1716, %v1717
  %v1719 = vrot.slane %v1718, 4
  %v1720 = vadd.f32 %v1718, %v1719
  %v1721 = vrot.slane %v1720, 2
  %v1722 = vadd.f32 %v1720, %v1721
  %v1723 = vrot.slane %v1722, 1
  %v1724 = vadd.f32 %v1722, %v1723
  %v1725 = vmul.f32 %v1703, %v1664
  %v1726 = vmul.f32 %v1724, %v1664
  %v1727 = vld [vmem:[%s12] sm:$0xff]
  %v1728 = vld [vmem:[%s12 + $0x8] sm:$0xff]
  %v1729 = vld [vmem:[%s12 + $0x10] sm:$0xff]
  %v1730 = vld [vmem:[%s12 + $0x18] sm:$0xff]
  %v1731 = vld [vmem:[%s13] sm:$0x1]
  %v1733 = vlaneseq
  %v1734 = vshrl.u32 %v1733, 7
  %v1735 = vsub.s32 0, %v1734
  %v1736 = vrot.slane %v1731, %v1735
  %v1740 = vsel %vm527, %v1666, %v1665
  %v1741 = vsel %vm490, %v1740, 0
  %1743 = vmatprep.subr.mxu0 0.0
  %1744 = vmatpush1.msra.mxu0 %v1727
  %1745 = vmatprep.subr.mxu0 0.0
  %1746 = vmatpush1.msra.mxu0 %v1728
  %1747 = vmatprep.subr.mxu0 0.0
  %1748 = vmatpush1.msra.mxu0 %v1729
  %1749 = vmatprep.subr.mxu0 0.0
  %1750 = vmatpush1.msra.mxu0 %v1730
  %1751 = vmatprep.subr.mxu0 0.0
  %1752 = vmatpush1.msra.mxu0 0.0
  %1753 = vmatprep.subr.mxu0 0.0
  %1754 = vmatpush1.msra.mxu0 0.0
  %1755 = vmatprep.subr.mxu0 0.0
  %1756 = vmatpush1.msra.mxu0 0.0
  %1757 = vmatprep.subr.mxu0 0.0
  %1758 = vmatpush1.msra.mxu0 0.0
  %1759 = vmatprep.subr.mxu0 0.0
  %1760 = vmatpush1.msra.mxu0 0.0
  %1761 = vmatprep.subr.mxu0 0.0
  %1762 = vmatpush1.msra.mxu0 0.0
  %1763 = vmatprep.subr.mxu0 0.0
  %1764 = vmatpush1.msra.mxu0 0.0
  %1765 = vmatprep.subr.mxu0 0.0
  %1766 = vmatpush1.msra.mxu0 0.0
  %1767 = vmatprep.subr.mxu0 0.0
  %1768 = vmatpush1.msra.mxu0 0.0
  %1769 = vmatprep.subr.mxu0 0.0
  %1770 = vmatpush1.msra.mxu0 0.0
  %1771 = vmatprep.subr.mxu0 0.0
  %1772 = vmatpush1.msra.mxu0 0.0
  %1773 = vmatprep.subr.mxu0 0.0
  %1774 = vmatpush1.msra.mxu0 0.0
  %1775 = vmatprep.subr.mxu0 0.0
  %1776 = vmatpush1.msra.mxu0 0.0
  %1777 = vmatprep.subr.mxu0 0.0
  %1778 = vmatpush1.msra.mxu0 0.0
  %1779 = vmatprep.subr.mxu0 0.0
  %1780 = vmatpush1.msra.mxu0 0.0
  %1781 = vmatprep.subr.mxu0 0.0
  %1782 = vmatpush1.msra.mxu0 0.0
  %1783 = vmatprep.subr.mxu0 0.0
  %1784 = vmatpush1.msra.mxu0 0.0
  %1785 = vmatprep.subr.mxu0 0.0
  %1786 = vmatpush1.msra.mxu0 0.0
  %1787 = vmatprep.subr.mxu0 0.0
  %1788 = vmatpush1.msra.mxu0 0.0
  %1789 = vmatprep.subr.mxu0 0.0
  %1790 = vmatpush1.msra.mxu0 0.0
  %1791 = vmatprep.subr.mxu0 0.0
  %1792 = vmatpush1.msra.mxu0 0.0
  %1793 = vmatprep.subr.mxu0 0.0
  %1794 = vmatpush1.msra.mxu0 0.0
  %1795 = vmatprep.subr.mxu0 0.0
  %1796 = vmatpush1.msra.mxu0 0.0
  %1797 = vmatprep.subr.mxu0 0.0
  %1798 = vmatpush1.msra.mxu0 0.0
  %1799 = vmatprep.subr.mxu0 0.0
  %1800 = vmatpush1.msra.mxu0 0.0
  %1801 = vmatprep.subr.mxu0 0.0
  %1802 = vmatpush1.msra.mxu0 0.0
  %1803 = vmatprep.subr.mxu0 0.0
  %1804 = vmatpush1.msra.mxu0 0.0
  %1805 = vmatprep.subr.mxu0 0.0
  %1806 = vmatpush1.msra.mxu0 0.0
  %1807 = vmatprep.mubr.f32.mxu0 0.0
  %1808 = vmatmul.mubr.f32.gmra.mrb[0].mxu0 %v1741
  %v1809 = vpop.f32.mrb[0].mxu0
  %v1810 = vadd.f32 %v1736, %v1809
  %v1811 = vpop.f32.mrb[0].mxu0
  %1812 = vdwg.mxu0
  %v1815 = vsel %vm527, %v1726, %v1725
  %v1816 = vsel %vm490, %v1815, 0
  %1818 = vmatprep.subr.mxu0 0.0
  %1819 = vmatpush1.msra.mxu0 %v1727
  %1820 = vmatprep.subr.mxu0 0.0
  %1821 = vmatpush1.msra.mxu0 %v1728
  %1822 = vmatprep.subr.mxu0 0.0
  %1823 = vmatpush1.msra.mxu0 %v1729
  %1824 = vmatprep.subr.mxu0 0.0
  %1825 = vmatpush1.msra.mxu0 %v1730
  %1826 = vmatprep.subr.mxu0 0.0
  %1827 = vmatpush1.msra.mxu0 0.0
  %1828 = vmatprep.subr.mxu0 0.0
  %1829 = vmatpush1.msra.mxu0 0.0
  %1830 = vmatprep.subr.mxu0 0.0
  %1831 = vmatpush1.msra.mxu0 0.0
  %1832 = vmatprep.subr.mxu0 0.0
  %1833 = vmatpush1.msra.mxu0 0.0
  %1834 = vmatprep.subr.mxu0 0.0
  %1835 = vmatpush1.msra.mxu0 0.0
  %1836 = vmatprep.subr.mxu0 0.0
  %1837 = vmatpush1.msra.mxu0 0.0
  %1838 = vmatprep.subr.mxu0 0.0
  %1839 = vmatpush1.msra.mxu0 0.0
  %1840 = vmatprep.subr.mxu0 0.0
  %1841 = vmatpush1.msra.mxu0 0.0
  %1842 = vmatprep.subr.mxu0 0.0
  %1843 = vmatpush1.msra.mxu0 0.0
  %1844 = vmatprep.subr.mxu0 0.0
  %1845 = vmatpush1.msra.mxu0 0.0
  %1846 = vmatprep.subr.mxu0 0.0
  %1847 = vmatpush1.msra.mxu0 0.0
  %1848 = vmatprep.subr.mxu0 0.0
  %1849 = vmatpush1.msra.mxu0 0.0
  %1850 = vmatprep.subr.mxu0 0.0
  %1851 = vmatpush1.msra.mxu0 0.0
  %1852 = vmatprep.subr.mxu0 0.0
  %1853 = vmatpush1.msra.mxu0 0.0
  %1854 = vmatprep.subr.mxu0 0.0
  %1855 = vmatpush1.msra.mxu0 0.0
  %1856 = vmatprep.subr.mxu0 0.0
  %1857 = vmatpush1.msra.mxu0 0.0
  %1858 = vmatprep.subr.mxu0 0.0
  %1859 = vmatpush1.msra.mxu0 0.0
  %1860 = vmatprep.subr.mxu0 0.0
  %1861 = vmatpush1.msra.mxu0 0.0
  %1862 = vmatprep.subr.mxu0 0.0
  %1863 = vmatpush1.msra.mxu0 0.0
  %1864 = vmatprep.subr.mxu0 0.0
  %1865 = vmatpush1.msra.mxu0 0.0
  %1866 = vmatprep.subr.mxu0 0.0
  %1867 = vmatpush1.msra.mxu0 0.0
  %1868 = vmatprep.subr.mxu0 0.0
  %1869 = vmatpush1.msra.mxu0 0.0
  %1870 = vmatprep.subr.mxu0 0.0
  %1871 = vmatpush1.msra.mxu0 0.0
  %1872 = vmatprep.subr.mxu0 0.0
  %1873 = vmatpush1.msra.mxu0 0.0
  %1874 = vmatprep.subr.mxu0 0.0
  %1875 = vmatpush1.msra.mxu0 0.0
  %1876 = vmatprep.subr.mxu0 0.0
  %1877 = vmatpush1.msra.mxu0 0.0
  %1878 = vmatprep.subr.mxu0 0.0
  %1879 = vmatpush1.msra.mxu0 0.0
  %1880 = vmatprep.subr.mxu0 0.0
  %1881 = vmatpush1.msra.mxu0 0.0
  %1882 = vmatprep.mubr.f32.mxu0 0.0
  %1883 = vmatmul.mubr.f32.gmra.mrb[0].mxu0 %v1816
  %v1884 = vpop.f32.mrb[0].mxu0
  %v1885 = vadd.f32 %v1736, %v1884
  %v1886 = vpop.f32.mrb[0].mxu0
  %1887 = vdwg.mxu0
  %v1888 = vxor.u32 %v1810, 2147483648
  %v1889 = vmul.f32 %v1888, 1.442695
  %v1890 = vpow.pop %v1889
  %v1891 = vadd.f32 %v1890, 1.0
  %v1892 = vrcp.pop %v1891
  %v1893 = vmul.f32 1.0, %v1892
  %v1894 = vxor.u32 %v1885, 2147483648
  %v1895 = vmul.f32 %v1894, 1.442695
  %v1896 = vpow.pop %v1895
  %v1897 = vadd.f32 %v1896, 1.0
  %v1898 = vrcp.pop %v1897
  %v1899 = vmul.f32 1.0, %v1898
  %v1900 = vmax.f32 %v1810, %v1885
  %v1901 = vsub.f32 %v1810, %v1900
  %v1902 = vmul.f32 %v1901, 1.442695
  %v1903 = vpow.pop %v1902
  %v1904 = vsub.f32 %v1885, %v1900
  %v1905 = vmul.f32 %v1904, 1.442695
  %v1906 = vpow.pop %v1905
  %v1907 = vadd.f32 %v1903, %v1906
  %v1908 = vrcp.pop %v1907
  %v1909 = vmul.f32 1.0, %v1908
  %v1910 = vmul.f32 %v1903, %v1909
  %v1913 = vunpack.c.l.s4 1966171168
  %v1914 = vunpack.c.0.s8 %v1913
  %v1915 = vlaneseq
  %v1916 = vshrl.u32 %v1915, 7
  %v1917 = vsub.s32 %v1914, %v1916
  %v1918 = vrot.slane %v1910, %v1917
  %v1919 = vcombine.high %v1918, %v1918
  %v1921 = vunpack.c.l.s4 1966171168
  %v1922 = vunpack.c.0.s8 %v1921
  %v1923 = vlaneseq
  %v1924 = vshrl.u32 %v1923, 7
  %v1925 = vsub.s32 %v1922, %v1924
  %v1926 = vrot.slane %v1918, %v1925
  %v1928 = vunpack.c.l.s4 1966171168
  %v1929 = vunpack.c.0.s8 %v1928
  %v1930 = vlaneseq
  %v1931 = vshrl.u32 %v1930, 7
  %v1932 = vsub.s32 %v1929, %v1931
  %v1933 = vrot.slane %v1919, %v1932
  %v1934 = vmul.f32 %v1906, %v1909
  %v1937 = vunpack.c.l.s4 1966171168
  %v1938 = vunpack.c.0.s8 %v1937
  %v1939 = vlaneseq
  %v1940 = vshrl.u32 %v1939, 7
  %v1941 = vsub.s32 %v1938, %v1940
  %v1942 = vrot.slane %v1934, %v1941
  %v1943 = vcombine.high %v1942, %v1942
  %v1945 = vunpack.c.l.s4 1966171168
  %v1946 = vunpack.c.0.s8 %v1945
  %v1947 = vlaneseq
  %v1948 = vshrl.u32 %v1947, 7
  %v1949 = vsub.s32 %v1946, %v1948
  %v1950 = vrot.slane %v1942, %v1949
  %v1952 = vunpack.c.l.s4 1966171168
  %v1953 = vunpack.c.0.s8 %v1952
  %v1954 = vlaneseq
  %v1955 = vshrl.u32 %v1954, 7
  %v1956 = vsub.s32 %v1953, %v1955
  %v1957 = vrot.slane %v1943, %v1956
  %v1958 = vlaneseq
  %v1959 = vshrl.u32 %v1958, 7
  %v1960 = vsub.s32 0, %v1959
  %v1961 = vrot.slane %v1926, %v1960
  %v1962 = vlaneseq
  %v1963 = vshrl.u32 %v1962, 7
  %v1964 = vsub.s32 0, %v1963
  %v1965 = vrot.slane %v1933, %v1964
  %1966 = vset.pattern.permute.xlu0 4
  %1967 = vperm.xlu0 %1966, %v1961
  %v1968 = vpop.permute.xlu0 %1967
  %1970 = vset.pattern.permute.xlu0 4
  %1971 = vperm.xlu0 %1970, %v1965
  %v1972 = vpop.permute.xlu0 %1971
  %v1974 = vmul.f32 %v1968, %v1274
  %v1975 = vmul.f32 %v1968, %v1275
  %v1976 = vmul.f32 %v1968, %v1276
  %v1977 = vmul.f32 %v1968, %v1277
  %v1978 = vmul.f32 %v1968, %v1278
  %v1979 = vmul.f32 %v1968, %v1279
  %v1980 = vmul.f32 %v1968, %v1280
  %v1981 = vmul.f32 %v1968, %v1281
  %v1982 = vmul.f32 %v1972, %v1282
  %v1983 = vmul.f32 %v1972, %v1283
  %v1984 = vmul.f32 %v1972, %v1284
  %v1985 = vmul.f32 %v1972, %v1285
  %v1986 = vmul.f32 %v1972, %v1286
  %v1987 = vmul.f32 %v1972, %v1287
  %v1988 = vmul.f32 %v1972, %v1288
  %v1989 = vmul.f32 %v1972, %v1289
  %v1990 = vlaneseq
  %v1991 = vshrl.u32 %v1990, 7
  %v1992 = vsub.s32 0, %v1991
  %v1993 = vrot.slane %v1950, %v1992
  %v1994 = vlaneseq
  %v1995 = vshrl.u32 %v1994, 7
  %v1996 = vsub.s32 0, %v1995
  %v1997 = vrot.slane %v1957, %v1996
  %1998 = vset.pattern.permute.xlu0 4
  %1999 = vperm.xlu0 %1998, %v1993
  %v2000 = vpop.permute.xlu0 %1999
  %2002 = vset.pattern.permute.xlu0 4
  %2003 = vperm.xlu0 %2002, %v1997
  %v2004 = vpop.permute.xlu0 %2003
  %v2006 = vmul.f32 %v2000, %v1590
  %v2007 = vmul.f32 %v2000, %v1591
  %v2008 = vmul.f32 %v2000, %v1592
  %v2009 = vmul.f32 %v2000, %v1593
  %v2010 = vmul.f32 %v2000, %v1594
  %v2011 = vmul.f32 %v2000, %v1595
  %v2012 = vmul.f32 %v2000, %v1596
  %v2013 = vmul.f32 %v2000, %v1597
  %v2014 = vmul.f32 %v2004, %v1598
  %v2015 = vmul.f32 %v2004, %v1599
  %v2016 = vmul.f32 %v2004, %v1600
  %v2017 = vmul.f32 %v2004, %v1601
  %v2018 = vmul.f32 %v2004, %v1602
  %v2019 = vmul.f32 %v2004, %v1603
  %v2020 = vmul.f32 %v2004, %v1604
  %v2021 = vmul.f32 %v2004, %v1605
  %v2022 = vadd.f32 %v1974, %v2006
  %v2023 = vadd.f32 %v1975, %v2007
  %v2024 = vadd.f32 %v1976, %v2008
  %v2025 = vadd.f32 %v1977, %v2009
  %v2026 = vadd.f32 %v1978, %v2010
  %v2027 = vadd.f32 %v1979, %v2011
  %v2028 = vadd.f32 %v1980, %v2012
  %v2029 = vadd.f32 %v1981, %v2013
  %v2030 = vadd.f32 %v1982, %v2014
  %v2031 = vadd.f32 %v1983, %v2015
  %v2032 = vadd.f32 %v1984, %v2016
  %v2033 = vadd.f32 %v1985, %v2017
  %v2034 = vadd.f32 %v1986, %v2018
  %v2035 = vadd.f32 %v1987, %v2019
  %v2036 = vadd.f32 %v1988, %v2020
  %v2037 = vadd.f32 %v1989, %v2021
  %v2038 = vmax.f32 %v2022, 0.0
  %v2039 = vmax.f32 %v2023, 0.0
  %v2040 = vmax.f32 %v2024, 0.0
  %v2041 = vmax.f32 %v2025, 0.0
  %v2042 = vmax.f32 %v2026, 0.0
  %v2043 = vmax.f32 %v2027, 0.0
  %v2044 = vmax.f32 %v2028, 0.0
  %v2045 = vmax.f32 %v2029, 0.0
  %v2046 = vmax.f32 %v2030, 0.0
  %v2047 = vmax.f32 %v2031, 0.0
  %v2048 = vmax.f32 %v2032, 0.0
  %v2049 = vmax.f32 %v2033, 0.0
  %v2050 = vmax.f32 %v2034, 0.0
  %v2051 = vmax.f32 %v2035, 0.0
  %v2052 = vmax.f32 %v2036, 0.0
  %v2053 = vmax.f32 %v2037, 0.0
  %v2054 = vsel %vm490, %v2038, 0.0
  %v2055 = vsel %vm490, %v2039, 0.0
  %v2056 = vadd.f32 %v2054, %v2055
  %v2057 = vsel %vm490, %v2040, 0.0
  %v2058 = vadd.f32 %v2056, %v2057
  %v2059 = vsel %vm490, %v2041, 0.0
  %v2060 = vadd.f32 %v2058, %v2059
  %v2061 = vsel %vm490, %v2042, 0.0
  %v2062 = vadd.f32 %v2060, %v2061
  %v2063 = vsel %vm490, %v2043, 0.0
  %v2064 = vadd.f32 %v2062, %v2063
  %v2065 = vsel %vm490, %v2044, 0.0
  %v2066 = vadd.f32 %v2064, %v2065
  %v2067 = vsel %vm490, %v2045, 0.0
  %v2068 = vadd.f32 %v2066, %v2067
  %v2069 = vrot.slane %v2068, 4
  %v2070 = vadd.f32 %v2068, %v2069
  %v2071 = vrot.slane %v2070, 2
  %v2072 = vadd.f32 %v2070, %v2071
  %v2073 = vrot.slane %v2072, 1
  %v2074 = vadd.f32 %v2072, %v2073
  %v2075 = vsel %vm490, %v2046, 0.0
  %v2076 = vsel %vm490, %v2047, 0.0
  %v2077 = vadd.f32 %v2075, %v2076
  %v2078 = vsel %vm490, %v2048, 0.0
  %v2079 = vadd.f32 %v2077, %v2078
  %v2080 = vsel %vm490, %v2049, 0.0
  %v2081 = vadd.f32 %v2079, %v2080
  %v2082 = vsel %vm490, %v2050, 0.0
  %v2083 = vadd.f32 %v2081, %v2082
  %v2084 = vsel %vm490, %v2051, 0.0
  %v2085 = vadd.f32 %v2083, %v2084
  %v2086 = vsel %vm490, %v2052, 0.0
  %v2087 = vadd.f32 %v2085, %v2086
  %v2088 = vsel %vm490, %v2053, 0.0
  %v2089 = vadd.f32 %v2087, %v2088
  %v2090 = vrot.slane %v2089, 4
  %v2091 = vadd.f32 %v2089, %v2090
  %v2092 = vrot.slane %v2091, 2
  %v2093 = vadd.f32 %v2091, %v2092
  %v2094 = vrot.slane %v2093, 1
  %v2095 = vadd.f32 %v2093, %v2094
  %v2096 = vmul.f32 %v2074, %v1664
  %v2097 = vmul.f32 %v2095, %v1664
  %v2100 = vsel %vm527, %v2097, %v2096
  %v2101 = vsel %vm490, %v2100, 0
  %2103 = vmatprep.subr.mxu0 0.0
  %2104 = vmatpush1.msra.mxu0 %v1727
  %2105 = vmatprep.subr.mxu0 0.0
  %2106 = vmatpush1.msra.mxu0 %v1728
  %2107 = vmatprep.subr.mxu0 0.0
  %2108 = vmatpush1.msra.mxu0 %v1729
  %2109 = vmatprep.subr.mxu0 0.0
  %2110 = vmatpush1.msra.mxu0 %v1730
  %2111 = vmatprep.subr.mxu0 0.0
  %2112 = vmatpush1.msra.mxu0 0.0
  %2113 = vmatprep.subr.mxu0 0.0
  %2114 = vmatpush1.msra.mxu0 0.0
  %2115 = vmatprep.subr.mxu0 0.0
  %2116 = vmatpush1.msra.mxu0 0.0
  %2117 = vmatprep.subr.mxu0 0.0
  %2118 = vmatpush1.msra.mxu0 0.0
  %2119 = vmatprep.subr.mxu0 0.0
  %2120 = vmatpush1.msra.mxu0 0.0
  %2121 = vmatprep.subr.mxu0 0.0
  %2122 = vmatpush1.msra.mxu0 0.0
  %2123 = vmatprep.subr.mxu0 0.0
  %2124 = vmatpush1.msra.mxu0 0.0
  %2125 = vmatprep.subr.mxu0 0.0
  %2126 = vmatpush1.msra.mxu0 0.0
  %2127 = vmatprep.subr.mxu0 0.0
  %2128 = vmatpush1.msra.mxu0 0.0
  %2129 = vmatprep.subr.mxu0 0.0
  %2130 = vmatpush1.msra.mxu0 0.0
  %2131 = vmatprep.subr.mxu0 0.0
  %2132 = vmatpush1.msra.mxu0 0.0
  %2133 = vmatprep.subr.mxu0 0.0
  %2134 = vmatpush1.msra.mxu0 0.0
  %2135 = vmatprep.subr.mxu0 0.0
  %2136 = vmatpush1.msra.mxu0 0.0
  %2137 = vmatprep.subr.mxu0 0.0
  %2138 = vmatpush1.msra.mxu0 0.0
  %2139 = vmatprep.subr.mxu0 0.0
  %2140 = vmatpush1.msra.mxu0 0.0
  %2141 = vmatprep.subr.mxu0 0.0
  %2142 = vmatpush1.msra.mxu0 0.0
  %2143 = vmatprep.subr.mxu0 0.0
  %2144 = vmatpush1.msra.mxu0 0.0
  %2145 = vmatprep.subr.mxu0 0.0
  %2146 = vmatpush1.msra.mxu0 0.0
  %2147 = vmatprep.subr.mxu0 0.0
  %2148 = vmatpush1.msra.mxu0 0.0
  %2149 = vmatprep.subr.mxu0 0.0
  %2150 = vmatpush1.msra.mxu0 0.0
  %2151 = vmatprep.subr.mxu0 0.0
  %2152 = vmatpush1.msra.mxu0 0.0
  %2153 = vmatprep.subr.mxu0 0.0
  %2154 = vmatpush1.msra.mxu0 0.0
  %2155 = vmatprep.subr.mxu0 0.0
  %2156 = vmatpush1.msra.mxu0 0.0
  %2157 = vmatprep.subr.mxu0 0.0
  %2158 = vmatpush1.msra.mxu0 0.0
  %2159 = vmatprep.subr.mxu0 0.0
  %2160 = vmatpush1.msra.mxu0 0.0
  %2161 = vmatprep.subr.mxu0 0.0
  %2162 = vmatpush1.msra.mxu0 0.0
  %2163 = vmatprep.subr.mxu0 0.0
  %2164 = vmatpush1.msra.mxu0 0.0
  %2165 = vmatprep.subr.mxu0 0.0
  %2166 = vmatpush1.msra.mxu0 0.0
  %2167 = vmatprep.mubr.f32.mxu0 0.0
  %2168 = vmatmul.mubr.f32.gmra.mrb[0].mxu0 %v2101
  %v2169 = vpop.f32.mrb[0].mxu0
  %v2170 = vadd.f32 %v1736, %v2169
  %v2171 = vpop.f32.mrb[0].mxu0
  %2172 = vdwg.mxu0
  %v2173 = vxor.u32 %v2170, 2147483648
  %v2174 = vmul.f32 %v2173, 1.442695
  %v2175 = vpow.pop %v2174
  %v2176 = vadd.f32 %v2175, 1.0
  %v2177 = vrcp.pop %v2176
  %v2178 = vmul.f32 1.0, %v2177
  %2180 = vrot.lane.b32.xlu0 %v1899, 5
  %v2181 = vpop.permute.xlu0 %2180
  %2184 = vrot.lane.b32.xlu0 %v1885, 5
  %v2185 = vpop.permute.xlu0 %2184
  %2188 = vrot.lane.b32.xlu0 %v2178, 10
  %v2189 = vpop.permute.xlu0 %2188
  %2192 = vrot.lane.b32.xlu0 %v2170, 10
  %v2193 = vpop.permute.xlu0 %2192
  %vm2195 = vcmask 31744
  %v2196 = vsel %vm2195, %v1893, %v1810
  %vm2197 = vcmask 39936
  %v2198 = vsel %vm2197, %v2196, %v2181
  %vm2199 = vcmask 72704
  %v2200 = vsel %vm2199, %v2198, %v2185
  %vm2201 = vcmask 80896
  %v2202 = vsel %vm2201, %v2200, %v2189
  %vm2203 = vcmask 113664
  %v2204 = vsel %vm2203, %v2202, %v2193
  %vm2205 = vcmask 121856
  %v2206 = vsel %vm2205, %v2204, 0.0
  %v2209 = vunpack.c.l.s4 1966171168
  %v2210 = vunpack.c.0.s8 %v2209
  %v2211 = vlaneseq
  %v2212 = vshrl.u32 %v2211, 7
  %v2213 = vsub.s32 %v2210, %v2212
  %v2214 = vrot.slane %v2206, %v2213
  %v2215 = vcombine.high %v2214, %v2214
  %v2217 = vunpack.c.l.s4 1966171168
  %v2218 = vunpack.c.0.s8 %v2217
  %v2219 = vlaneseq
  %v2220 = vshrl.u32 %v2219, 7
  %v2221 = vsub.s32 %v2218, %v2220
  %v2222 = vrot.slane %v2214, %v2221
  %v2224 = vunpack.c.l.s4 1966171168
  %v2225 = vunpack.c.0.s8 %v2224
  %v2226 = vlaneseq
  %v2227 = vshrl.u32 %v2226, 7
  %v2228 = vsub.s32 %v2225, %v2227
  %v2229 = vrot.slane %v2215, %v2228
  %vm2232 = vcmask 122880
  %2233 = vst.msk [vmem:[%s14] sm:$0x1] %vm2232, %v2222
  %2234 = vst.msk [vmem:[%s14 + $0x1] sm:$0x1] %vm2232, %v2229
  // Predicated region
  $region58: #{_forward_core.1} parent=0 // pred_check
    _
  $region59: #{_forward_core.1} parent=0 // pred_check_branch
    %2236 = sbr.rel (0) target = $region61
  $region60: #{_forward_core.1} parent=0 // pred_region
    _
  $region61: #{_forward_core.1} parent=0 // pred_fallthru
    _
  // Predicated region
  $region62: #{_forward_core.1} parent=0 // pred_check
    _
  $region63: #{_forward_core.1} parent=0 // pred_check_branch
    %2238 = sbr.rel (0) target = $region65
  $region64: #{_forward_core.1} parent=0 // pred_region
    _
  $region65: #{_forward_core.1} parent=0 // pred_fallthru
    _

</llo_original>
